<compile_context>
chip_gen: v6e
topology: v6e:2x2x1
jax: 0.10.0
libtpu: 0.0.40
codegen_flags: <defaults>
</compile_context>

<pallas_src>
import functools

import jax
import jax.numpy as jnp
from jax.experimental import pallas as pl
from jax.experimental.pallas import tpu as pltpu

TILE_M = 128  # rows of the flattened input processed per grid step


# ----------------------------------------------------------------------------
# In-kernel math helpers
# ----------------------------------------------------------------------------
def _erf(x):
    """erf via Abramowitz & Stegun 7.1.26 (max abs error ~1.5e-7 ≈ f32 eps).

    Uses only abs/exp/fma/select so it lowers cleanly in Mosaic on every TPU generation.
    """
    a1 = 0.254829592
    a2 = -0.284496736
    a3 = 1.421413741
    a4 = -1.453152027
    a5 = 1.061405429
    p = 0.3275911
    ax = jnp.abs(x)
    t = 1.0 / (1.0 + p * ax)
    poly = ((((a5 * t + a4) * t + a3) * t + a2) * t + a1) * t
    y = 1.0 - poly * jnp.exp(-ax * ax)
    return jnp.where(x >= 0.0, y, -y)


def _gelu_exact(x):
    """nn.GELU() default (approximate='none'): 0.5 * x * (1 + erf(x / sqrt(2)))."""
    return 0.5 * x * (1.0 + _erf(x * 0.7071067811865476))


# ----------------------------------------------------------------------------
# Fused MLP kernel: one row-tile of tokens -> fc1 + GELU + fc2 (dropout = identity in eval)
# ----------------------------------------------------------------------------
def mlp_kernel(x_ref, w1_ref, b1_ref, w2_ref, b2_ref, o_ref):
    # x_ref:  (TM, IN)    row tile of flattened tokens
    # w1_ref: (IN, HID)   fc1.weight^T        b1_ref: (1, HID)
    # w2_ref: (HID, OUT)  fc2.weight^T        b2_ref: (1, OUT)
    # o_ref:  (TM, OUT)
    h = jnp.dot(x_ref[...], w1_ref[...], preferred_element_type=jnp.float32) + b1_ref[...]
    h = _gelu_exact(h)
    y = jnp.dot(h, w2_ref[...], preferred_element_type=jnp.float32) + b2_ref[...]
    o_ref[...] = y.astype(o_ref.dtype)


# ----------------------------------------------------------------------------
# Wrapper
# ----------------------------------------------------------------------------
@jax.jit
def mlp_forward(x, params):
    """x: (..., in_features) -> (..., out_features).  Eval-mode Mlp forward."""
    w1_t = params["w1_t"]   # (IN, HID)
    b1 = params["b1"]       # (1, HID)
    w2_t = params["w2_t"]   # (HID, OUT)
    b2 = params["b2"]       # (1, OUT)

    in_f, hid = w1_t.shape
    out_f = w2_t.shape[1]

    lead = x.shape[:-1]
    x2d = x.reshape(-1, in_f)
    m = x2d.shape[0]

    # Pad rows up to a multiple of the tile so the row-grid is exact; padded rows compute
    # throwaway values (zero input) and are stripped below.
    tm = min(TILE_M, max(8, m))
    m_pad = pl.cdiv(m, tm) * tm
    if m_pad != m:
        x2d = jnp.pad(x2d, ((0, m_pad - m), (0, 0)))

    out = pl.pallas_call(
        mlp_kernel,
        out_shape=jax.ShapeDtypeStruct((m_pad, out_f), x.dtype),
        grid=(m_pad // tm,),
        in_specs=[
            pl.BlockSpec((tm, in_f), lambda i: (i, 0)),      # x row tile
            pl.BlockSpec((in_f, hid), lambda i: (0, 0)),     # fc1 W^T (resident)
            pl.BlockSpec((1, hid), lambda i: (0, 0)),        # fc1 b   (resident)
            pl.BlockSpec((hid, out_f), lambda i: (0, 0)),    # fc2 W^T (resident)
            pl.BlockSpec((1, out_f), lambda i: (0, 0)),      # fc2 b   (resident)
        ],
        out_specs=pl.BlockSpec((tm, out_f), lambda i: (i, 0)),
        compiler_params=pltpu.CompilerParams(
            dimension_semantics=("parallel",)),
    )(x2d, w1_t, b1, w2_t, b2)

    out = out[:m]
    return out.reshape(*lead, out_f)


# ----------------------------------------------------------------------------
# Parameter init (PyTorch nn.Linear default: U(-1/sqrt(fan_in), 1/sqrt(fan_in)))
# ----------------------------------------------------------------------------
def init_mlp_params(key, in_features, hidden_features, out_features):
    k1, k2, k3, k4 = jax.random.split(key, 4)
    s1 = 1.0 / (in_features ** 0.5)
    s2 = 1.0 / (hidden_features ** 0.5)
    w1 = jax.random.uniform(k1, (hidden_features, in_features), jnp.float32, -s1, s1)
    b1 = jax.random.uniform(k2, (hidden_features,), jnp.float32, -s1, s1)
    w2 = jax.random.uniform(k3, (out_features, hidden_features), jnp.float32, -s2, s2)
    b2 = jax.random.uniform(k4, (out_features,), jnp.float32, -s2, s2)
    return {
        "w1_t": w1.T,          # (IN, HID)  pre-transposed so the kernel does (M,K)@(K,N)
        "b1": b1[None, :],     # (1, HID)
        "w2_t": w2.T,          # (HID, OUT)
        "b2": b2[None, :],     # (1, OUT)
    }


def mlp_reference(x, params):
    """Pure-JAX reference (eval mode), highest-precision dots, exact GELU."""
    h = jnp.dot(x, params["w1_t"], precision=jax.lax.Precision.HIGHEST) + params["b1"]
    h = jax.nn.gelu(h, approximate=False)
    return jnp.dot(h, params["w2_t"], precision=jax.lax.Precision.HIGHEST) + params["b2"]


if __name__ == "__main__":
    # Small, lane-aligned demo shapes consistent with a transformer MLP block usage:
    # tokens x = (batch, seq, in_features).
    batch, seq = 2, 128
    in_features, hidden_features, out_features = 128, 256, 128

    key = jax.random.PRNGKey(0)
    kx, kp = jax.random.split(key)
    x = jax.random.normal(kx, (batch, seq, in_features), jnp.float32)
    params = init_mlp_params(kp, in_features, hidden_features, out_features)

    y = mlp_forward(x, params)
    y = jax.block_until_ready(y)

    assert y.shape == (batch, seq, out_features), y.shape
    assert bool(jnp.all(jnp.isfinite(y)))

    # Correctness vs. pure-JAX reference (tolerance generous enough for MXU f32 rounding).
    y_ref = mlp_reference(x, params)
    max_err = float(jnp.max(jnp.abs(y - y_ref)))
    assert jnp.allclose(y, y_ref, atol=2e-2, rtol=2e-2), f"max abs err {max_err}"

    print("KERNEL_OK")
</pallas_src>

<mosaic_0001>
module attributes {stable_mosaic.version = 11 : i64} {
  func.func @mlp_kernel(%arg0: i32, %arg1: memref<128x128xf32, #tpu.memory_space<vmem>>, %arg2: memref<128x256xf32, #tpu.memory_space<vmem>>, %arg3: memref<1x256xf32, #tpu.memory_space<vmem>>, %arg4: memref<256x128xf32, #tpu.memory_space<vmem>>, %arg5: memref<1x128xf32, #tpu.memory_space<vmem>>, %arg6: memref<128x128xf32, #tpu.memory_space<vmem>>) attributes {dimension_semantics = [#tpu.dimension_semantics<parallel>], iteration_bounds = array<i64: 2>, scalar_prefetch = 0 : i64, scratch_operands = 0 : i64, tpu.core_type = #tpu.core_type<tc>, window_params = [{transform_indices = @transform_0, window_bounds = array<i64: 128, 128>}, {pipeline_mode = #tpu.pipeline_mode<synchronous>, transform_indices = @transform_1, window_bounds = array<i64: 128, 256>}, {pipeline_mode = #tpu.pipeline_mode<synchronous>, transform_indices = @transform_2, window_bounds = array<i64: 1, 256>}, {pipeline_mode = #tpu.pipeline_mode<synchronous>, transform_indices = @transform_3, window_bounds = array<i64: 256, 128>}, {pipeline_mode = #tpu.pipeline_mode<synchronous>, transform_indices = @transform_4, window_bounds = array<i64: 1, 128>}, {transform_indices = @transform_5, window_bounds = array<i64: 128, 128>}]} {
    %c0 = arith.constant 0 : index
    %c0_0 = arith.constant 0 : index
    %0 = vector.load %arg1[%c0, %c0_0] : memref<128x128xf32, #tpu.memory_space<vmem>>, vector<128x128xf32>
    %c0_1 = arith.constant 0 : index
    %c0_2 = arith.constant 0 : index
    %1 = vector.load %arg2[%c0_1, %c0_2] : memref<128x256xf32, #tpu.memory_space<vmem>>, vector<128x256xf32>
    %cst = arith.constant dense<0.000000e+00> : vector<128x256xf32>
    %2 = tpu.matmul %0, %1, %cst {dimension_numbers = #tpu.dot_dimension_numbers<[1], [0], [0], [1], [0, 0, 1, 1], [], []>} : vector<128x128xf32>, vector<128x256xf32>, vector<128x256xf32> -> vector<128x256xf32>
    %c0_3 = arith.constant 0 : index
    %c0_4 = arith.constant 0 : index
    %3 = vector.load %arg3[%c0_3, %c0_4] : memref<1x256xf32, #tpu.memory_space<vmem>>, vector<1x256xf32>
    %4 = vector.broadcast %3 : vector<1x256xf32> to vector<128x256xf32>
    %5 = arith.addf %2, %4 : vector<128x256xf32>
    %cst_5 = arith.constant 5.000000e-01 : f32
    %6 = vector.broadcast %cst_5 : f32 to vector<128x256xf32>
    %7 = arith.mulf %6, %5 : vector<128x256xf32>
    %cst_6 = arith.constant 0.707106769 : f32
    %8 = vector.broadcast %cst_6 : f32 to vector<128x256xf32>
    %9 = arith.mulf %5, %8 : vector<128x256xf32>
    %10 = math.absf %9 : vector<128x256xf32>
    %cst_7 = arith.constant 0.327591091 : f32
    %11 = vector.broadcast %cst_7 : f32 to vector<128x256xf32>
    %12 = arith.mulf %11, %10 : vector<128x256xf32>
    %cst_8 = arith.constant 1.000000e+00 : f32
    %13 = vector.broadcast %cst_8 : f32 to vector<128x256xf32>
    %14 = arith.addf %13, %12 : vector<128x256xf32>
    %cst_9 = arith.constant 1.000000e+00 : f32
    %15 = vector.broadcast %cst_9 : f32 to vector<128x256xf32>
    %16 = arith.divf %15, %14 : vector<128x256xf32>
    %cst_10 = arith.constant 1.06140542 : f32
    %17 = vector.broadcast %cst_10 : f32 to vector<128x256xf32>
    %18 = arith.mulf %17, %16 : vector<128x256xf32>
    %cst_11 = arith.constant -1.45315206 : f32
    %19 = vector.broadcast %cst_11 : f32 to vector<128x256xf32>
    %20 = arith.addf %18, %19 : vector<128x256xf32>
    %21 = arith.mulf %20, %16 : vector<128x256xf32>
    %cst_12 = arith.constant 1.42141378 : f32
    %22 = vector.broadcast %cst_12 : f32 to vector<128x256xf32>
    %23 = arith.addf %21, %22 : vector<128x256xf32>
    %24 = arith.mulf %23, %16 : vector<128x256xf32>
    %cst_13 = arith.constant -0.284496725 : f32
    %25 = vector.broadcast %cst_13 : f32 to vector<128x256xf32>
    %26 = arith.addf %24, %25 : vector<128x256xf32>
    %27 = arith.mulf %26, %16 : vector<128x256xf32>
    %cst_14 = arith.constant 0.254829586 : f32
    %28 = vector.broadcast %cst_14 : f32 to vector<128x256xf32>
    %29 = arith.addf %27, %28 : vector<128x256xf32>
    %30 = arith.mulf %29, %16 : vector<128x256xf32>
    %cst_15 = arith.constant 0.000000e+00 : f32
    %31 = vector.broadcast %cst_15 : f32 to vector<128x256xf32>
    %32 = arith.subf %31, %10 : vector<128x256xf32>
    %33 = arith.mulf %32, %10 : vector<128x256xf32>
    %34 = math.exp %33 : vector<128x256xf32>
    %35 = arith.mulf %30, %34 : vector<128x256xf32>
    %cst_16 = arith.constant 1.000000e+00 : f32
    %36 = vector.broadcast %cst_16 : f32 to vector<128x256xf32>
    %37 = arith.subf %36, %35 : vector<128x256xf32>
    %cst_17 = arith.constant 0.000000e+00 : f32
    %38 = vector.broadcast %cst_17 : f32 to vector<128x256xf32>
    %39 = arith.cmpf oge, %9, %38 : vector<128x256xf32>
    %cst_18 = arith.constant 0.000000e+00 : f32
    %40 = vector.broadcast %cst_18 : f32 to vector<128x256xf32>
    %41 = arith.subf %40, %37 : vector<128x256xf32>
    %42 = arith.select %39, %37, %41 : vector<128x256xi1>, vector<128x256xf32>
    %cst_19 = arith.constant 1.000000e+00 : f32
    %43 = vector.broadcast %cst_19 : f32 to vector<128x256xf32>
    %44 = arith.addf %43, %42 : vector<128x256xf32>
    %45 = arith.mulf %7, %44 : vector<128x256xf32>
    %c0_20 = arith.constant 0 : index
    %c0_21 = arith.constant 0 : index
    %46 = vector.load %arg4[%c0_20, %c0_21] : memref<256x128xf32, #tpu.memory_space<vmem>>, vector<256x128xf32>
    %cst_22 = arith.constant dense<0.000000e+00> : vector<128x128xf32>
    %47 = tpu.matmul %45, %46, %cst_22 {dimension_numbers = #tpu.dot_dimension_numbers<[1], [0], [0], [1], [0, 0, 1, 1], [], []>} : vector<128x256xf32>, vector<256x128xf32>, vector<128x128xf32> -> vector<128x128xf32>
    %c0_23 = arith.constant 0 : index
    %c0_24 = arith.constant 0 : index
    %48 = vector.load %arg5[%c0_23, %c0_24] : memref<1x128xf32, #tpu.memory_space<vmem>>, vector<1x128xf32>
    %49 = vector.broadcast %48 : vector<1x128xf32> to vector<128x128xf32>
    %50 = arith.addf %47, %49 : vector<128x128xf32>
    %c0_25 = arith.constant 0 : index
    %c0_26 = arith.constant 0 : index
    %51 = vector.load %arg6[%c0_25, %c0_26] : memref<128x128xf32, #tpu.memory_space<vmem>>, vector<128x128xf32>
    tpu.vector_store %arg6[%c0_25, %c0_26], %50 {strides = array<i32>} : memref<128x128xf32, #tpu.memory_space<vmem>>, vector<128x128xf32>,
    return
  }
  func.func @transform_0(%arg0: i32) -> (i32, i32) {
    %c0_i32 = arith.constant 0 : i32
    %c0_i32_0 = arith.constant 0 : i32
    return %arg0, %c0_i32 : i32, i32
  }
  func.func @transform_1(%arg0: i32) -> (i32, i32) {
    %c0_i32 = arith.constant 0 : i32
    %c0_i32_0 = arith.constant 0 : i32
    %c0_i32_1 = arith.constant 0 : i32
    return %c0_i32, %c0_i32_0 : i32, i32
  }
  func.func @transform_2(%arg0: i32) -> (i32, i32) {
    %c0_i32 = arith.constant 0 : i32
    %c0_i32_0 = arith.constant 0 : i32
    %c0_i32_1 = arith.constant 0 : i32
    return %c0_i32, %c0_i32_0 : i32, i32
  }
  func.func @transform_3(%arg0: i32) -> (i32, i32) {
    %c0_i32 = arith.constant 0 : i32
    %c0_i32_0 = arith.constant 0 : i32
    %c0_i32_1 = arith.constant 0 : i32
    return %c0_i32, %c0_i32_0 : i32, i32
  }
  func.func @transform_4(%arg0: i32) -> (i32, i32) {
    %c0_i32 = arith.constant 0 : i32
    %c0_i32_0 = arith.constant 0 : i32
    %c0_i32_1 = arith.constant 0 : i32
    return %c0_i32, %c0_i32_0 : i32, i32
  }
  func.func @transform_5(%arg0: i32) -> (i32, i32) {
    %c0_i32 = arith.constant 0 : i32
    %c0_i32_0 = arith.constant 0 : i32
    return %arg0, %c0_i32 : i32, i32
  }
}

</mosaic_0001>

<llo_original>
// kernel: mlp_forward.1
$region0: #{mlp_forward.1}
  #allocation0 [shape = 'u32[]', space=smem, size = 0x4, offset = 0x4, fixed_abs, tag = 'smem constant byte address 0x4 - core index']
  #allocation1 [shape = 'u32[144,128]{1,0:T(1,128)}', space=vmem, size = 0x12000, scoped, tag = 'internal scratch']
  %s0 = inlined_call_operand.hbm [shape: f32[256,128], index: 0, kind: input, shape index: {}]
  %s1 = inlined_call_operand.hbm [shape: f32[128,256], index: 1, kind: input, shape index: {}]
  %s2 = inlined_call_operand.vmem [shape: f32[1,256], index: 2, kind: input, shape index: {}]
  %s3 = inlined_call_operand.hbm [shape: f32[256,128], index: 3, kind: input, shape index: {}]
  %s4 = inlined_call_operand.vmem [shape: f32[1,128], index: 4, kind: input, shape index: {}]
  %s5 = inlined_call_operand.hbm [shape: f32[256,128], index: 5, kind: output, shape index: {}]
  %s6 = sld [smem:[#allocation0]]
  $region65: #{mlp_forward.1} parent=0
    _
  %s8 = ssub.s32 1, %s6
  %s9 = scalar_select 0, %s8, %s6
  $region1: #{mlp_forward.1} parent=0
    #allocation2 [shape = 'u8[131072]{0}', space=vmem, size = 0x20000, scoped, tag = 'input window, operand 0']
    #allocation3 [shape = 's32[2]{0}', space=sflag, size = 0x8, scoped, tag = 'scoped memory for mlp_forward.1']
    #allocation4 [shape = 's32[2]{0}', space=sflag, size = 0x8, scoped, tag = 'scoped memory for mlp_forward.1']
    #allocation5 [shape = 'u8[131072]{0}', space=vmem, size = 0x20000, scoped, tag = 'input window, operand 1, single buffered']
    #allocation6 [shape = 's32[1]{0}', space=sflag, size = 0x4, scoped, tag = 'scoped memory for mlp_forward.1']
    #allocation7 [shape = 'u8[131072]{0}', space=vmem, size = 0x20000, scoped, tag = 'input window, operand 3, single buffered']
    #allocation8 [shape = 'u8[131072]{0}', space=vmem, size = 0x20000, scoped, tag = 'output window, operand 0']
    %10 = vsyncpa [#allocation3], 0
    %s11 = scalar_lea.sflag [#allocation3], 1
    %12 = vsyncpa %s11, 0
    %13 = vsyncpa [#allocation6], 0
    %14 = vsyncpa [#allocation4], 0
    %s15 = scalar_lea.sflag [#allocation4], 1
    %16 = vsyncpa %s15, 0
    loop: start=0, step=1, limit=4
    $region2: #{mlp_forward.1} parent=1 // loop_pre_header
      _
    $region3: #{mlp_forward.1} parent=1 // loop_header
      %s18 = sphi 0, %s22
      %p19 = scmp.ge.s32.totalorder %s18, 4
      %s28 = sphi 0, %s30
      %s31 = sphi 0, %s28
      %s32 = sphi 0, %s31
      %s48 = sphi 0, %s32
      %s52 = sphi 0, %s52
      %s54 = sphi 0, %s52
      %s55 = sphi 0, %s54
      %s69 = sphi 0, %s55
      %s73 = sphi 0, %s73
      %s75 = sphi 0, %s73
      %s76 = sphi 0, %s75
      %s90 = sphi 0, %s76
      %s94 = sphi 0, %s94
      %s96 = sphi 0, %s94
      %s97 = sphi 0, %s96
      %s111 = sphi 0, %s97
      %s115 = sphi 0, %s115
      %s117 = sphi 0, %s115
      %s118 = sphi 0, %s117
      %s132 = sphi 0, %s118
      %s138 = sphi 0, %s140
      %s141 = sphi 0, %s138
      %s142 = sphi 0, %s141
      %s158 = sphi 0, %s142
    $region4: #{mlp_forward.1} parent=1 // loop_header_branch
      %21 = sbr.rel (%p19) target = $region8
    $region5: #{mlp_forward.1} parent=1 // loop_body
      %s23 = ssub.s32 %s18, 1
      %s24 = ssub.s32 %s18, 2
      %s25 = sadd.s32 %s18, 1
      %s26 = ssub.s32 %s18, %s25
      %p27 = scmp.eq.s32.totalorder %s26, 0
      %s29 = sadd.s32 %s28, 1
      %s30 = scalar_select %p27, %s28, %s29
      %p33 = pneg %p27
      %p34 = scmp.eq.s32.totalorder %s18, 1
      %p35 = por %p33, %p34
      %p36 = scmp.ne.s32.totalorder %s28, %s31
      %p37 = scmp.eq.s32.totalorder %s18, 0
      %p38 = por %p36, %p37
      %p39 = scmp.ne.s32.totalorder %s28, %s31
      %p40 = scmp.eq.s32.totalorder %s23, 1
      %p41 = por %p39, %p40
      %p42 = scmp.ne.s32.totalorder %s31, %s32
      %p43 = scmp.eq.s32.totalorder %s23, 0
      %p44 = por %p42, %p43
      %p45 = scmp.ne.s32.totalorder %s31, %s32
      %p46 = scmp.eq.s32.totalorder %s24, 1
      %p47 = por %p45, %p46
      %p49 = scmp.ne.s32.totalorder %s32, %s48
      %p50 = scmp.eq.s32.totalorder %s24, 0
      %p51 = por %p49, %p50
      %s53 = sadd.s32 %s52, 1
      %p56 = scmp.eq.s32.totalorder %s18, 1
      %p57 = scmp.ne.s32.totalorder %s52, %s54
      %p58 = scmp.eq.s32.totalorder %s18, 0
      %p59 = por %p57, %p58
      %p60 = scmp.ne.s32.totalorder %s52, %s54
      %p61 = scmp.eq.s32.totalorder %s23, 1
      %p62 = por %p60, %p61
      %p63 = scmp.ne.s32.totalorder %s54, %s55
      %p64 = scmp.eq.s32.totalorder %s23, 0
      %p65 = por %p63, %p64
      %p66 = scmp.ne.s32.totalorder %s54, %s55
      %p67 = scmp.eq.s32.totalorder %s24, 1
      %p68 = por %p66, %p67
      %p70 = scmp.ne.s32.totalorder %s55, %s69
      %p71 = scmp.eq.s32.totalorder %s24, 0
      %p72 = por %p70, %p71
      %s74 = sadd.s32 %s73, 1
      %p77 = scmp.eq.s32.totalorder %s18, 1
      %p78 = scmp.ne.s32.totalorder %s73, %s75
      %p79 = scmp.eq.s32.totalorder %s18, 0
      %p80 = por %p78, %p79
      %p81 = scmp.ne.s32.totalorder %s73, %s75
      %p82 = scmp.eq.s32.totalorder %s23, 1
      %p83 = por %p81, %p82
      %p84 = scmp.ne.s32.totalorder %s75, %s76
      %p85 = scmp.eq.s32.totalorder %s23, 0
      %p86 = por %p84, %p85
      %p87 = scmp.ne.s32.totalorder %s75, %s76
      %p88 = scmp.eq.s32.totalorder %s24, 1
      %p89 = por %p87, %p88
      %p91 = scmp.ne.s32.totalorder %s76, %s90
      %p92 = scmp.eq.s32.totalorder %s24, 0
      %p93 = por %p91, %p92
      %s95 = sadd.s32 %s94, 1
      %p98 = scmp.eq.s32.totalorder %s18, 1
      %p99 = scmp.ne.s32.totalorder %s94, %s96
      %p100 = scmp.eq.s32.totalorder %s18, 0
      %p101 = por %p99, %p100
      %p102 = scmp.ne.s32.totalorder %s94, %s96
      %p103 = scmp.eq.s32.totalorder %s23, 1
      %p104 = por %p102, %p103
      %p105 = scmp.ne.s32.totalorder %s96, %s97
      %p106 = scmp.eq.s32.totalorder %s23, 0
      %p107 = por %p105, %p106
      %p108 = scmp.ne.s32.totalorder %s96, %s97
      %p109 = scmp.eq.s32.totalorder %s24, 1
      %p110 = por %p108, %p109
      %p112 = scmp.ne.s32.totalorder %s97, %s111
      %p113 = scmp.eq.s32.totalorder %s24, 0
      %p114 = por %p112, %p113
      %s116 = sadd.s32 %s115, 1
      %p119 = scmp.eq.s32.totalorder %s18, 1
      %p120 = scmp.ne.s32.totalorder %s115, %s117
      %p121 = scmp.eq.s32.totalorder %s18, 0
      %p122 = por %p120, %p121
      %p123 = scmp.ne.s32.totalorder %s115, %s117
      %p124 = scmp.eq.s32.totalorder %s23, 1
      %p125 = por %p123, %p124
      %p126 = scmp.ne.s32.totalorder %s117, %s118
      %p127 = scmp.eq.s32.totalorder %s23, 0
      %p128 = por %p126, %p127
      %p129 = scmp.ne.s32.totalorder %s117, %s118
      %p130 = scmp.eq.s32.totalorder %s24, 1
      %p131 = por %p129, %p130
      %p133 = scmp.ne.s32.totalorder %s118, %s132
      %p134 = scmp.eq.s32.totalorder %s24, 0
      %p135 = por %p133, %p134
      %s136 = ssub.s32 %s18, %s25
      %p137 = scmp.eq.s32.totalorder %s136, 0
      %s139 = sadd.s32 %s138, 1
      %s140 = scalar_select %p137, %s138, %s139
      %p143 = pneg %p137
      %p144 = scmp.eq.s32.totalorder %s18, 1
      %p145 = por %p143, %p144
      %p146 = scmp.ne.s32.totalorder %s138, %s141
      %p147 = scmp.eq.s32.totalorder %s18, 0
      %p148 = por %p146, %p147
      %p149 = scmp.ne.s32.totalorder %s138, %s141
      %p150 = scmp.eq.s32.totalorder %s23, 1
      %p151 = por %p149, %p150
      %p152 = scmp.ne.s32.totalorder %s141, %s142
      %p153 = scmp.eq.s32.totalorder %s23, 0
      %p154 = por %p152, %p153
      %p155 = scmp.ne.s32.totalorder %s141, %s142
      %p156 = scmp.eq.s32.totalorder %s24, 1
      %p157 = por %p155, %p156
      %p159 = scmp.ne.s32.totalorder %s142, %s158
      %p160 = scmp.eq.s32.totalorder %s24, 0
      %p161 = por %p159, %p160
      %p162 = scmp.le.s32.totalorder 1, %s18
      %p163 = scmp.lt.s32.totalorder %s18, 3
      %p164 = pnand %p162, %p163
      %p165 = pneg %p164
      // Predicated region
      $region9: #{mlp_forward.1} parent=5 // pred_check
        _
      $region10: #{mlp_forward.1} parent=5 // pred_check_branch
        %167 = sbr.rel (%p164) target = $region12
      $region11: #{mlp_forward.1} parent=5 // pred_region
        %s168 = ssub.s32 %s18, 1
        // Predicated region
        $region13: #{mlp_forward.1} parent=11 // pred_check
          %p169 = pneg %p65
        $region14: #{mlp_forward.1} parent=11 // pred_check_branch
          %171 = sbr.rel (%p169) target = $region16
        $region15: #{mlp_forward.1} parent=11 // pred_region
          %s173 = ssub.s32 4096, 4096
          %174 = vsyncadd [#allocation6], %s173
          %s175 = sshll.u32 [#allocation5], 4
          %s176 = int_to_ptr.vmem [resolvable:$true] %s175
          %181 = dma.hbm_to_vmem [thread:$0]  %s1, 4096, %s176, [#allocation6], 256, 256, 16
        $region16: #{mlp_forward.1} parent=11 // pred_fallthru
          _
        // Predicated region
        $region17: #{mlp_forward.1} parent=11 // pred_check
          %p182 = pneg %p86
        $region18: #{mlp_forward.1} parent=11 // pred_check_branch
          %184 = sbr.rel (%p182) target = $region20
        $region19: #{mlp_forward.1} parent=11 // pred_region
          _
        $region20: #{mlp_forward.1} parent=11 // pred_fallthru
          _
        // Predicated region
        $region21: #{mlp_forward.1} parent=11 // pred_check
          %p185 = pneg %p107
        $region22: #{mlp_forward.1} parent=11 // pred_check_branch
          %187 = sbr.rel (%p185) target = $region24
        $region23: #{mlp_forward.1} parent=11 // pred_region
          %s189 = ssub.s32 4096, 4096
          %190 = vsyncadd [#allocation6], %s189
          %s191 = sshll.u32 [#allocation7], 4
          %s192 = int_to_ptr.vmem [resolvable:$true] %s191
          %197 = dma.hbm_to_vmem [thread:$0]  %s3, 4096, %s192, [#allocation6], 128, 128, 8
        $region24: #{mlp_forward.1} parent=11 // pred_fallthru
          _
        // Predicated region
        $region25: #{mlp_forward.1} parent=11 // pred_check
          %p198 = pneg %p128
        $region26: #{mlp_forward.1} parent=11 // pred_check_branch
          %200 = sbr.rel (%p198) target = $region28
        $region27: #{mlp_forward.1} parent=11 // pred_region
          _
        $region28: #{mlp_forward.1} parent=11 // pred_fallthru
          _
      $region12: #{mlp_forward.1} parent=5 // pred_fallthru
        _
      %p201 = scmp.lt.s32.totalorder %s18, 2
      // Predicated region
      $region29: #{mlp_forward.1} parent=5 // pred_check
        %p202 = pneg %p201
      $region30: #{mlp_forward.1} parent=5 // pred_check_branch
        %204 = sbr.rel (%p202) target = $region32
      $region31: #{mlp_forward.1} parent=5 // pred_region
        // Predicated region
        $region33: #{mlp_forward.1} parent=31 // pred_check
          %p205 = pneg %p38
        $region34: #{mlp_forward.1} parent=31 // pred_check_branch
          %207 = sbr.rel (%p205) target = $region36
        $region35: #{mlp_forward.1} parent=31 // pred_region
          %s208 = sand.u32 %s28, 1
          %s209 = scalar_lea.sflag [#allocation3], %s208
          %s210 = sand.u32 %s28, 1
          %s211 = smul.addr %s210, 128
          %s212 = scalar_lea.vmem [#allocation2], %s211
          %s213 = smul.u32 16, %s18
          %s215 = ssub.s32 2048, 2048
          %216 = vsyncadd %s209, %s215
          %s217 = smul.addr %s213, 128
          %s218 = scalar_lea.hbm %s0, %s217
          %s219 = sshll.u32 %s212, 4
          %s220 = int_to_ptr.vmem [resolvable:$true] %s219
          %225 = dma.hbm_to_vmem [thread:$0]  %s218, 2048, %s220, %s209, 128, 128, 8
        $region36: #{mlp_forward.1} parent=31 // pred_fallthru
          _
      $region32: #{mlp_forward.1} parent=5 // pred_fallthru
        _
      %p226 = scmp.le.s32.totalorder 1, %s18
      %p227 = scmp.lt.s32.totalorder %s18, 3
      %p228 = pnand %p226, %p227
      %p229 = pneg %p228
      // Predicated region
      $region37: #{mlp_forward.1} parent=5 // pred_check
        _
      $region38: #{mlp_forward.1} parent=5 // pred_check_branch
        %231 = sbr.rel (%p228) target = $region40
      $region39: #{mlp_forward.1} parent=5 // pred_region
        %s232 = ssub.s32 %s18, 1
        %s233 = sand.u32 %s31, 1
        %s234 = scalar_lea.sflag [#allocation3], %s233
        %s235 = sand.u32 %s31, 1
        %s236 = smul.addr %s235, 128
        %s237 = scalar_lea.vmem [#allocation2], %s236
        // Predicated region
        $region41: #{mlp_forward.1} parent=39 // pred_check
          %p238 = pneg %p44
        $region42: #{mlp_forward.1} parent=39 // pred_check_branch
          %240 = sbr.rel (%p238) target = $region44
        $region43: #{mlp_forward.1} parent=39 // pred_region
          %241 = dma.done %s234, 2048
        $region44: #{mlp_forward.1} parent=39 // pred_fallthru
          _
        // Predicated region
        $region45: #{mlp_forward.1} parent=39 // pred_check
          %p242 = pneg %p65
        $region46: #{mlp_forward.1} parent=39 // pred_check_branch
          %244 = sbr.rel (%p242) target = $region48
        $region47: #{mlp_forward.1} parent=39 // pred_region
          %245 = dma.done [#allocation6], 4096
        $region48: #{mlp_forward.1} parent=39 // pred_fallthru
          _
        // Predicated region
        $region49: #{mlp_forward.1} parent=39 // pred_check
          %p246 = pneg %p107
        $region50: #{mlp_forward.1} parent=39 // pred_check_branch
          %248 = sbr.rel (%p246) target = $region52
        $region51: #{mlp_forward.1} parent=39 // pred_region
          %249 = dma.done [#allocation6], 4096
        $region52: #{mlp_forward.1} parent=39 // pred_fallthru
          _
        %s250 = sand.u32 %s31, 1
        %s251 = scalar_lea.sflag [#allocation3], %s250
        %s252 = sand.u32 %s31, 1
        %s253 = smul.addr %s252, 128
        %s254 = scalar_lea.vmem [#allocation2], %s253
        %p255 = pneg %p44
        %p256 = pneg %p41
        %p257 = pneg %p65
        %p258 = pneg %p62
        %p259 = pneg %p86
        %p260 = pneg %p83
        %p261 = pneg %p107
        %p262 = pneg %p104
        %p263 = pneg %p128
        %p264 = pneg %p125
        %p265 = pneg %p154
        %p266 = pneg %p151
        %s267 = sand.u32 %s141, 1
        %s268 = scalar_lea.sflag [#allocation4], %s267
        %s269 = sand.u32 %s141, 1
        %s270 = smul.addr %s269, 128
        %s271 = scalar_lea.vmem [#allocation8], %s270
        %s272 = smul.u32 16, %s23
        %s273 = smul.u32 16, %s23
        %v274 = vld [vmem:[%s237] sm:$0xff]
        %v275 = vld [vmem:[%s237 + $0x8] sm:$0xff]
        %v276 = vld [vmem:[%s237 + $0x10] sm:$0xff]
        %v277 = vld [vmem:[%s237 + $0x18] sm:$0xff]
        %v278 = vld [vmem:[%s237 + $0x20] sm:$0xff]
        %v279 = vld [vmem:[%s237 + $0x28] sm:$0xff]
        %v280 = vld [vmem:[%s237 + $0x30] sm:$0xff]
        %v281 = vld [vmem:[%s237 + $0x38] sm:$0xff]
        %v282 = vld [vmem:[%s237 + $0x40] sm:$0xff]
        %v283 = vld [vmem:[%s237 + $0x48] sm:$0xff]
        %v284 = vld [vmem:[%s237 + $0x50] sm:$0xff]
        %v285 = vld [vmem:[%s237 + $0x58] sm:$0xff]
        %v286 = vld [vmem:[%s237 + $0x60] sm:$0xff]
        %v287 = vld [vmem:[%s237 + $0x68] sm:$0xff]
        %v288 = vld [vmem:[%s237 + $0x70] sm:$0xff]
        %v289 = vld [vmem:[%s237 + $0x78] sm:$0xff]
        %v290 = vld [vmem:[#allocation5] sm:$0xff]
        %v291 = vld [vmem:[#allocation5 + $0x8] sm:$0xff]
        %v292 = vld [vmem:[#allocation5 + $0x10] sm:$0xff]
        %v293 = vld [vmem:[#allocation5 + $0x18] sm:$0xff]
        %v294 = vld [vmem:[#allocation5 + $0x20] sm:$0xff]
        %v295 = vld [vmem:[#allocation5 + $0x28] sm:$0xff]
        %v296 = vld [vmem:[#allocation5 + $0x30] sm:$0xff]
        %v297 = vld [vmem:[#allocation5 + $0x38] sm:$0xff]
        %v298 = vld [vmem:[#allocation5 + $0x40] sm:$0xff]
        %v299 = vld [vmem:[#allocation5 + $0x48] sm:$0xff]
        %v300 = vld [vmem:[#allocation5 + $0x50] sm:$0xff]
        %v301 = vld [vmem:[#allocation5 + $0x58] sm:$0xff]
        %v302 = vld [vmem:[#allocation5 + $0x60] sm:$0xff]
        %v303 = vld [vmem:[#allocation5 + $0x68] sm:$0xff]
        %v304 = vld [vmem:[#allocation5 + $0x70] sm:$0xff]
        %v305 = vld [vmem:[#allocation5 + $0x78] sm:$0xff]
        %v306 = vld [vmem:[#allocation5 + $0x80] sm:$0xff]
        %v307 = vld [vmem:[#allocation5 + $0x88] sm:$0xff]
        %v308 = vld [vmem:[#allocation5 + $0x90] sm:$0xff]
        %v309 = vld [vmem:[#allocation5 + $0x98] sm:$0xff]
        %v310 = vld [vmem:[#allocation5 + $0xa0] sm:$0xff]
        %v311 = vld [vmem:[#allocation5 + $0xa8] sm:$0xff]
        %v312 = vld [vmem:[#allocation5 + $0xb0] sm:$0xff]
        %v313 = vld [vmem:[#allocation5 + $0xb8] sm:$0xff]
        %v314 = vld [vmem:[#allocation5 + $0xc0] sm:$0xff]
        %v315 = vld [vmem:[#allocation5 + $0xc8] sm:$0xff]
        %v316 = vld [vmem:[#allocation5 + $0xd0] sm:$0xff]
        %v317 = vld [vmem:[#allocation5 + $0xd8] sm:$0xff]
        %v318 = vld [vmem:[#allocation5 + $0xe0] sm:$0xff]
        %v319 = vld [vmem:[#allocation5 + $0xe8] sm:$0xff]
        %v320 = vld [vmem:[#allocation5 + $0xf0] sm:$0xff]
        %v321 = vld [vmem:[#allocation5 + $0xf8] sm:$0xff]
        %v322 = vld [vmem:[%s2] sm:$0x3]
        %v324 = vlaneseq
        %v325 = vshrl.u32 %v324, 7
        %v326 = vsub.s32 0, %v325
        %v327 = vrot.slane %v322, %v326
        %v328 = vlaneseq
        %v329 = vshrl.u32 %v328, 7
        %v330 = vsub.s32 1, %v329
        %v331 = vrot.slane %v322, %v330
        %334 = vmatprep.subr.mxu0 %v321
        %335 = vmatpush1.msra.mxu0 %v320
        %336 = vmatprep.subr.mxu0 %v319
        %337 = vmatpush1.msra.mxu0 %v318
        %338 = vmatprep.subr.mxu0 %v317
        %339 = vmatpush1.msra.mxu0 %v316
        %340 = vmatprep.subr.mxu0 %v315
        %341 = vmatpush1.msra.mxu0 %v314
        %342 = vmatprep.subr.mxu0 %v313
        %343 = vmatpush1.msra.mxu0 %v312
        %344 = vmatprep.subr.mxu0 %v311
        %345 = vmatpush1.msra.mxu0 %v310
        %346 = vmatprep.subr.mxu0 %v309
        %347 = vmatpush1.msra.mxu0 %v308
        %348 = vmatprep.subr.mxu0 %v307
        %349 = vmatpush1.msra.mxu0 %v306
        %350 = vmatprep.subr.mxu0 %v305
        %351 = vmatpush1.msra.mxu0 %v304
        %352 = vmatprep.subr.mxu0 %v303
        %353 = vmatpush1.msra.mxu0 %v302
        %354 = vmatprep.subr.mxu0 %v301
        %355 = vmatpush1.msra.mxu0 %v300
        %356 = vmatprep.subr.mxu0 %v299
        %357 = vmatpush1.msra.mxu0 %v298
        %358 = vmatprep.subr.mxu0 %v297
        %359 = vmatpush1.msra.mxu0 %v296
        %360 = vmatprep.subr.mxu0 %v295
        %361 = vmatpush1.msra.mxu0 %v294
        %362 = vmatprep.subr.mxu0 %v293
        %363 = vmatpush1.msra.mxu0 %v292
        %364 = vmatprep.subr.mxu0 %v291
        %365 = vmatpush1.msra.mxu0 %v290
        %366 = vmatprep.subr.mxu0 0.0
        %367 = vmatpush2.msra.mxu0 0.0
        %368 = vmatprep.subr.mxu0 0.0
        %369 = vmatpush2.msra.mxu0 0.0
        %370 = vmatprep.subr.mxu0 0.0
        %371 = vmatpush2.msra.mxu0 0.0
        %372 = vmatprep.subr.mxu0 0.0
        %373 = vmatpush2.msra.mxu0 0.0
        %374 = vmatprep.subr.mxu0 0.0
        %375 = vmatpush2.msra.mxu0 0.0
        %376 = vmatprep.subr.mxu0 0.0
        %377 = vmatpush2.msra.mxu0 0.0
        %378 = vmatprep.subr.mxu0 0.0
        %379 = vmatpush2.msra.mxu0 0.0
        %380 = vmatprep.subr.mxu0 0.0
        %381 = vmatpush2.msra.mxu0 0.0
        %382 = vmatprep.subr.mxu0 0.0
        %383 = vmatpush2.msra.mxu0 0.0
        %384 = vmatprep.subr.mxu0 0.0
        %385 = vmatpush2.msra.mxu0 0.0
        %386 = vmatprep.subr.mxu0 0.0
        %387 = vmatpush2.msra.mxu0 0.0
        %388 = vmatprep.subr.mxu0 0.0
        %389 = vmatpush2.msra.mxu0 0.0
        %390 = vmatprep.subr.mxu0 0.0
        %391 = vmatpush2.msra.mxu0 0.0
        %392 = vmatprep.subr.mxu0 0.0
        %393 = vmatpush2.msra.mxu0 0.0
        %394 = vmatprep.subr.mxu0 0.0
        %395 = vmatpush2.msra.mxu0 0.0
        %396 = vmatprep.subr.mxu0 0.0
        %397 = vmatpush2.msra.mxu0 0.0
        %398 = vmatprep.mubr.f32.mxu0 0.0
        %399 = vmatmul.mubr.f32.gmra.mxu0 %v274
        %v400 = vpop.f32.mrf.mxu0
        %v401 = vadd.f32 %v327, %v400
        %v402 = vpop.f32.mrf.mxu0
        %v403 = vadd.f32 %v331, %v402
        %404 = vmatprep.mubr.f32.mxu0 0.0
        %405 = vmatmul.mubr.f32.gmra.mxu0 %v275
        %v406 = vpop.f32.mrf.mxu0
        %v407 = vadd.f32 %v327, %v406
        %v408 = vpop.f32.mrf.mxu0
        %v409 = vadd.f32 %v331, %v408
        %410 = vmatprep.mubr.f32.mxu0 0.0
        %411 = vmatmul.mubr.f32.gmra.mxu0 %v276
        %v412 = vpop.f32.mrf.mxu0
        %v413 = vadd.f32 %v327, %v412
        %v414 = vpop.f32.mrf.mxu0
        %v415 = vadd.f32 %v331, %v414
        %416 = vmatprep.mubr.f32.mxu0 0.0
        %417 = vmatmul.mubr.f32.gmra.mxu0 %v277
        %v418 = vpop.f32.mrf.mxu0
        %v419 = vadd.f32 %v327, %v418
        %v420 = vpop.f32.mrf.mxu0
        %v421 = vadd.f32 %v331, %v420
        %422 = vmatprep.mubr.f32.mxu0 0.0
        %423 = vmatmul.mubr.f32.gmra.mxu0 %v278
        %v424 = vpop.f32.mrf.mxu0
        %v425 = vadd.f32 %v327, %v424
        %v426 = vpop.f32.mrf.mxu0
        %v427 = vadd.f32 %v331, %v426
        %428 = vmatprep.mubr.f32.mxu0 0.0
        %429 = vmatmul.mubr.f32.gmra.mxu0 %v279
        %v430 = vpop.f32.mrf.mxu0
        %v431 = vadd.f32 %v327, %v430
        %v432 = vpop.f32.mrf.mxu0
        %v433 = vadd.f32 %v331, %v432
        %434 = vmatprep.mubr.f32.mxu0 0.0
        %435 = vmatmul.mubr.f32.gmra.mxu0 %v280
        %v436 = vpop.f32.mrf.mxu0
        %v437 = vadd.f32 %v327, %v436
        %v438 = vpop.f32.mrf.mxu0
        %v439 = vadd.f32 %v331, %v438
        %440 = vmatprep.mubr.f32.mxu0 0.0
        %441 = vmatmul.mubr.f32.gmra.mxu0 %v281
        %v442 = vpop.f32.mrf.mxu0
        %v443 = vadd.f32 %v327, %v442
        %v444 = vpop.f32.mrf.mxu0
        %v445 = vadd.f32 %v331, %v444
        %446 = vmatprep.mubr.f32.mxu0 0.0
        %447 = vmatmul.mubr.f32.gmra.mxu0 %v282
        %v448 = vpop.f32.mrf.mxu0
        %v449 = vadd.f32 %v327, %v448
        %v450 = vpop.f32.mrf.mxu0
        %v451 = vadd.f32 %v331, %v450
        %452 = vmatprep.mubr.f32.mxu0 0.0
        %453 = vmatmul.mubr.f32.gmra.mxu0 %v283
        %v454 = vpop.f32.mrf.mxu0
        %v455 = vadd.f32 %v327, %v454
        %v456 = vpop.f32.mrf.mxu0
        %v457 = vadd.f32 %v331, %v456
        %458 = vmatprep.mubr.f32.mxu0 0.0
        %459 = vmatmul.mubr.f32.gmra.mxu0 %v284
        %v460 = vpop.f32.mrf.mxu0
        %v461 = vadd.f32 %v327, %v460
        %v462 = vpop.f32.mrf.mxu0
        %v463 = vadd.f32 %v331, %v462
        %464 = vmatprep.mubr.f32.mxu0 0.0
        %465 = vmatmul.mubr.f32.gmra.mxu0 %v285
        %v466 = vpop.f32.mrf.mxu0
        %v467 = vadd.f32 %v327, %v466
        %v468 = vpop.f32.mrf.mxu0
        %v469 = vadd.f32 %v331, %v468
        %470 = vmatprep.mubr.f32.mxu0 0.0
        %471 = vmatmul.mubr.f32.gmra.mxu0 %v286
        %v472 = vpop.f32.mrf.mxu0
        %v473 = vadd.f32 %v327, %v472
        %v474 = vpop.f32.mrf.mxu0
        %v475 = vadd.f32 %v331, %v474
        %476 = vmatprep.mubr.f32.mxu0 0.0
        %477 = vmatmul.mubr.f32.gmra.mxu0 %v287
        %v478 = vpop.f32.mrf.mxu0
        %v479 = vadd.f32 %v327, %v478
        %v480 = vpop.f32.mrf.mxu0
        %v481 = vadd.f32 %v331, %v480
        %482 = vmatprep.mubr.f32.mxu0 0.0
        %483 = vmatmul.mubr.f32.gmra.mxu0 %v288
        %v484 = vpop.f32.mrf.mxu0
        %v485 = vadd.f32 %v327, %v484
        %v486 = vpop.f32.mrf.mxu0
        %v487 = vadd.f32 %v331, %v486
        %488 = vmatprep.mubr.f32.mxu0 0.0
        %489 = vmatmul.mubr.f32.gmra.mxu0 %v289
        %v490 = vpop.f32.mrf.mxu0
        %v491 = vadd.f32 %v327, %v490
        %v492 = vpop.f32.mrf.mxu0
        %v493 = vadd.f32 %v331, %v492
        %494 = vdwg.mxu0
        %v495 = vmul.f32 %v401, 0.5
        %v496 = vmul.f32 %v403, 0.5
        %v497 = vmul.f32 %v407, 0.5
        %v498 = vmul.f32 %v409, 0.5
        %v499 = vmul.f32 %v413, 0.5
        %v500 = vmul.f32 %v415, 0.5
        %v501 = vmul.f32 %v419, 0.5
        %v502 = vmul.f32 %v421, 0.5
        %v503 = vmul.f32 %v425, 0.5
        %v504 = vmul.f32 %v427, 0.5
        %v505 = vmul.f32 %v431, 0.5
        %v506 = vmul.f32 %v433, 0.5
        %v507 = vmul.f32 %v437, 0.5
        %v508 = vmul.f32 %v439, 0.5
        %v509 = vmul.f32 %v443, 0.5
        %v510 = vmul.f32 %v445, 0.5
        %v511 = vmul.f32 %v449, 0.5
        %v512 = vmul.f32 %v451, 0.5
        %v513 = vmul.f32 %v455, 0.5
        %v514 = vmul.f32 %v457, 0.5
        %v515 = vmul.f32 %v461, 0.5
        %v516 = vmul.f32 %v463, 0.5
        %v517 = vmul.f32 %v467, 0.5
        %v518 = vmul.f32 %v469, 0.5
        %v519 = vmul.f32 %v473, 0.5
        %v520 = vmul.f32 %v475, 0.5
        %v521 = vmul.f32 %v479, 0.5
        %v522 = vmul.f32 %v481, 0.5
        %v523 = vmul.f32 %v485, 0.5
        %v524 = vmul.f32 %v487, 0.5
        %v525 = vmul.f32 %v491, 0.5
        %v526 = vmul.f32 %v493, 0.5
        %v527 = vmul.f32 %v401, 0.70710677
        %v528 = vmul.f32 %v403, 0.70710677
        %v529 = vmul.f32 %v407, 0.70710677
        %v530 = vmul.f32 %v409, 0.70710677
        %v531 = vmul.f32 %v413, 0.70710677
        %v532 = vmul.f32 %v415, 0.70710677
        %v533 = vmul.f32 %v419, 0.70710677
        %v534 = vmul.f32 %v421, 0.70710677
        %v535 = vmul.f32 %v425, 0.70710677
        %v536 = vmul.f32 %v427, 0.70710677
        %v537 = vmul.f32 %v431, 0.70710677
        %v538 = vmul.f32 %v433, 0.70710677
        %v539 = vmul.f32 %v437, 0.70710677
        %v540 = vmul.f32 %v439, 0.70710677
        %v541 = vmul.f32 %v443, 0.70710677
        %v542 = vmul.f32 %v445, 0.70710677
        %v543 = vmul.f32 %v449, 0.70710677
        %v544 = vmul.f32 %v451, 0.70710677
        %v545 = vmul.f32 %v455, 0.70710677
        %v546 = vmul.f32 %v457, 0.70710677
        %v547 = vmul.f32 %v461, 0.70710677
        %v548 = vmul.f32 %v463, 0.70710677
        %v549 = vmul.f32 %v467, 0.70710677
        %v550 = vmul.f32 %v469, 0.70710677
        %v551 = vmul.f32 %v473, 0.70710677
        %v552 = vmul.f32 %v475, 0.70710677
        %v553 = vmul.f32 %v479, 0.70710677
        %v554 = vmul.f32 %v481, 0.70710677
        %v555 = vmul.f32 %v485, 0.70710677
        %v556 = vmul.f32 %v487, 0.70710677
        %v557 = vmul.f32 %v491, 0.70710677
        %v558 = vmul.f32 %v493, 0.70710677
        %v559 = vand.u32 2147483647, %v527
        %v560 = vand.u32 2147483647, %v528
        %v561 = vand.u32 2147483647, %v529
        %v562 = vand.u32 2147483647, %v530
        %v563 = vand.u32 2147483647, %v531
        %v564 = vand.u32 2147483647, %v532
        %v565 = vand.u32 2147483647, %v533
        %v566 = vand.u32 2147483647, %v534
        %v567 = vand.u32 2147483647, %v535
        %v568 = vand.u32 2147483647, %v536
        %v569 = vand.u32 2147483647, %v537
        %v570 = vand.u32 2147483647, %v538
        %v571 = vand.u32 2147483647, %v539
        %v572 = vand.u32 2147483647, %v540
        %v573 = vand.u32 2147483647, %v541
        %v574 = vand.u32 2147483647, %v542
        %v575 = vand.u32 2147483647, %v543
        %v576 = vand.u32 2147483647, %v544
        %v577 = vand.u32 2147483647, %v545
        %v578 = vand.u32 2147483647, %v546
        %v579 = vand.u32 2147483647, %v547
        %v580 = vand.u32 2147483647, %v548
        %v581 = vand.u32 2147483647, %v549
        %v582 = vand.u32 2147483647, %v550
        %v583 = vand.u32 2147483647, %v551
        %v584 = vand.u32 2147483647, %v552
        %v585 = vand.u32 2147483647, %v553
        %v586 = vand.u32 2147483647, %v554
        %v587 = vand.u32 2147483647, %v555
        %v588 = vand.u32 2147483647, %v556
        %v589 = vand.u32 2147483647, %v557
        %v590 = vand.u32 2147483647, %v558
        %v591 = vmul.f32 %v559, 0.3275911
        %v592 = vmul.f32 %v560, 0.3275911
        %v593 = vmul.f32 %v561, 0.3275911
        %v594 = vmul.f32 %v562, 0.3275911
        %v595 = vmul.f32 %v563, 0.3275911
        %v596 = vmul.f32 %v564, 0.3275911
        %v597 = vmul.f32 %v565, 0.3275911
        %v598 = vmul.f32 %v566, 0.3275911
        %v599 = vmul.f32 %v567, 0.3275911
        %v600 = vmul.f32 %v568, 0.3275911
        %v601 = vmul.f32 %v569, 0.3275911
        %v602 = vmul.f32 %v570, 0.3275911
        %v603 = vmul.f32 %v571, 0.3275911
        %v604 = vmul.f32 %v572, 0.3275911
        %v605 = vmul.f32 %v573, 0.3275911
        %v606 = vmul.f32 %v574, 0.3275911
        %v607 = vmul.f32 %v575, 0.3275911
        %v608 = vmul.f32 %v576, 0.3275911
        %v609 = vmul.f32 %v577, 0.3275911
        %v610 = vmul.f32 %v578, 0.3275911
        %v611 = vmul.f32 %v579, 0.3275911
        %v612 = vmul.f32 %v580, 0.3275911
        %v613 = vmul.f32 %v581, 0.3275911
        %v614 = vmul.f32 %v582, 0.3275911
        %v615 = vmul.f32 %v583, 0.3275911
        %v616 = vmul.f32 %v584, 0.3275911
        %v617 = vmul.f32 %v585, 0.3275911
        %v618 = vmul.f32 %v586, 0.3275911
        %v619 = vmul.f32 %v587, 0.3275911
        %v620 = vmul.f32 %v588, 0.3275911
        %v621 = vmul.f32 %v589, 0.3275911
        %v622 = vmul.f32 %v590, 0.3275911
        %v623 = vadd.f32 %v591, 1.0
        %v624 = vadd.f32 %v592, 1.0
        %v625 = vadd.f32 %v593, 1.0
        %v626 = vadd.f32 %v594, 1.0
        %v627 = vadd.f32 %v595, 1.0
        %v628 = vadd.f32 %v596, 1.0
        %v629 = vadd.f32 %v597, 1.0
        %v630 = vadd.f32 %v598, 1.0
        %v631 = vadd.f32 %v599, 1.0
        %v632 = vadd.f32 %v600, 1.0
        %v633 = vadd.f32 %v601, 1.0
        %v634 = vadd.f32 %v602, 1.0
        %v635 = vadd.f32 %v603, 1.0
        %v636 = vadd.f32 %v604, 1.0
        %v637 = vadd.f32 %v605, 1.0
        %v638 = vadd.f32 %v606, 1.0
        %v639 = vadd.f32 %v607, 1.0
        %v640 = vadd.f32 %v608, 1.0
        %v641 = vadd.f32 %v609, 1.0
        %v642 = vadd.f32 %v610, 1.0
        %v643 = vadd.f32 %v611, 1.0
        %v644 = vadd.f32 %v612, 1.0
        %v645 = vadd.f32 %v613, 1.0
        %v646 = vadd.f32 %v614, 1.0
        %v647 = vadd.f32 %v615, 1.0
        %v648 = vadd.f32 %v616, 1.0
        %v649 = vadd.f32 %v617, 1.0
        %v650 = vadd.f32 %v618, 1.0
        %v651 = vadd.f32 %v619, 1.0
        %v652 = vadd.f32 %v620, 1.0
        %v653 = vadd.f32 %v621, 1.0
        %v654 = vadd.f32 %v622, 1.0
        %v655 = vrcp.pop %v623
        %v656 = vmul.f32 1.0, %v655
        %v657 = vrcp.pop %v624
        %v658 = vmul.f32 1.0, %v657
        %v659 = vrcp.pop %v625
        %v660 = vmul.f32 1.0, %v659
        %v661 = vrcp.pop %v626
        %v662 = vmul.f32 1.0, %v661
        %v663 = vrcp.pop %v627
        %v664 = vmul.f32 1.0, %v663
        %v665 = vrcp.pop %v628
        %v666 = vmul.f32 1.0, %v665
        %v667 = vrcp.pop %v629
        %v668 = vmul.f32 1.0, %v667
        %v669 = vrcp.pop %v630
        %v670 = vmul.f32 1.0, %v669
        %v671 = vrcp.pop %v631
        %v672 = vmul.f32 1.0, %v671
        %v673 = vrcp.pop %v632
        %v674 = vmul.f32 1.0, %v673
        %v675 = vrcp.pop %v633
        %v676 = vmul.f32 1.0, %v675
        %v677 = vrcp.pop %v634
        %v678 = vmul.f32 1.0, %v677
        %v679 = vrcp.pop %v635
        %v680 = vmul.f32 1.0, %v679
        %v681 = vrcp.pop %v636
        %v682 = vmul.f32 1.0, %v681
        %v683 = vrcp.pop %v637
        %v684 = vmul.f32 1.0, %v683
        %v685 = vrcp.pop %v638
        %v686 = vmul.f32 1.0, %v685
        %v687 = vrcp.pop %v639
        %v688 = vmul.f32 1.0, %v687
        %v689 = vrcp.pop %v640
        %v690 = vmul.f32 1.0, %v689
        %v691 = vrcp.pop %v641
        %v692 = vmul.f32 1.0, %v691
        %v693 = vrcp.pop %v642
        %v694 = vmul.f32 1.0, %v693
        %v695 = vrcp.pop %v643
        %v696 = vmul.f32 1.0, %v695
        %v697 = vrcp.pop %v644
        %v698 = vmul.f32 1.0, %v697
        %v699 = vrcp.pop %v645
        %v700 = vmul.f32 1.0, %v699
        %v701 = vrcp.pop %v646
        %v702 = vmul.f32 1.0, %v701
        %v703 = vrcp.pop %v647
        %v704 = vmul.f32 1.0, %v703
        %v705 = vrcp.pop %v648
        %v706 = vmul.f32 1.0, %v705
        %v707 = vrcp.pop %v649
        %v708 = vmul.f32 1.0, %v707
        %v709 = vrcp.pop %v650
        %v710 = vmul.f32 1.0, %v709
        %v711 = vrcp.pop %v651
        %v712 = vmul.f32 1.0, %v711
        %v713 = vrcp.pop %v652
        %v714 = vmul.f32 1.0, %v713
        %v715 = vrcp.pop %v653
        %v716 = vmul.f32 1.0, %v715
        %v717 = vrcp.pop %v654
        %v718 = vmul.f32 1.0, %v717
        %v719 = vmul.f32 %v656, 1.0614054
        %v720 = vmul.f32 %v658, 1.0614054
        %v721 = vmul.f32 %v660, 1.0614054
        %v722 = vmul.f32 %v662, 1.0614054
        %v723 = vmul.f32 %v664, 1.0614054
        %v724 = vmul.f32 %v666, 1.0614054
        %v725 = vmul.f32 %v668, 1.0614054
        %v726 = vmul.f32 %v670, 1.0614054
        %v727 = vmul.f32 %v672, 1.0614054
        %v728 = vmul.f32 %v674, 1.0614054
        %v729 = vmul.f32 %v676, 1.0614054
        %v730 = vmul.f32 %v678, 1.0614054
        %v731 = vmul.f32 %v680, 1.0614054
        %v732 = vmul.f32 %v682, 1.0614054
        %v733 = vmul.f32 %v684, 1.0614054
        %v734 = vmul.f32 %v686, 1.0614054
        %v735 = vmul.f32 %v688, 1.0614054
        %v736 = vmul.f32 %v690, 1.0614054
        %v737 = vmul.f32 %v692, 1.0614054
        %v738 = vmul.f32 %v694, 1.0614054
        %v739 = vmul.f32 %v696, 1.0614054
        %v740 = vmul.f32 %v698, 1.0614054
        %v741 = vmul.f32 %v700, 1.0614054
        %v742 = vmul.f32 %v702, 1.0614054
        %v743 = vmul.f32 %v704, 1.0614054
        %v744 = vmul.f32 %v706, 1.0614054
        %v745 = vmul.f32 %v708, 1.0614054
        %v746 = vmul.f32 %v710, 1.0614054
        %v747 = vmul.f32 %v712, 1.0614054
        %v748 = vmul.f32 %v714, 1.0614054
        %v749 = vmul.f32 %v716, 1.0614054
        %v750 = vmul.f32 %v718, 1.0614054
        %v751 = vadd.f32 %v719, -1.4531521
        %v752 = vadd.f32 %v720, -1.4531521
        %v753 = vadd.f32 %v721, -1.4531521
        %v754 = vadd.f32 %v722, -1.4531521
        %v755 = vadd.f32 %v723, -1.4531521
        %v756 = vadd.f32 %v724, -1.4531521
        %v757 = vadd.f32 %v725, -1.4531521
        %v758 = vadd.f32 %v726, -1.4531521
        %v759 = vadd.f32 %v727, -1.4531521
        %v760 = vadd.f32 %v728, -1.4531521
        %v761 = vadd.f32 %v729, -1.4531521
        %v762 = vadd.f32 %v730, -1.4531521
        %v763 = vadd.f32 %v731, -1.4531521
        %v764 = vadd.f32 %v732, -1.4531521
        %v765 = vadd.f32 %v733, -1.4531521
        %v766 = vadd.f32 %v734, -1.4531521
        %v767 = vadd.f32 %v735, -1.4531521
        %v768 = vadd.f32 %v736, -1.4531521
        %v769 = vadd.f32 %v737, -1.4531521
        %v770 = vadd.f32 %v738, -1.4531521
        %v771 = vadd.f32 %v739, -1.4531521
        %v772 = vadd.f32 %v740, -1.4531521
        %v773 = vadd.f32 %v741, -1.4531521
        %v774 = vadd.f32 %v742, -1.4531521
        %v775 = vadd.f32 %v743, -1.4531521
        %v776 = vadd.f32 %v744, -1.4531521
        %v777 = vadd.f32 %v745, -1.4531521
        %v778 = vadd.f32 %v746, -1.4531521
        %v779 = vadd.f32 %v747, -1.4531521
        %v780 = vadd.f32 %v748, -1.4531521
        %v781 = vadd.f32 %v749, -1.4531521
        %v782 = vadd.f32 %v750, -1.4531521
        %v783 = vmul.f32 %v751, %v656
        %v784 = vmul.f32 %v752, %v658
        %v785 = vmul.f32 %v753, %v660
        %v786 = vmul.f32 %v754, %v662
        %v787 = vmul.f32 %v755, %v664
        %v788 = vmul.f32 %v756, %v666
        %v789 = vmul.f32 %v757, %v668
        %v790 = vmul.f32 %v758, %v670
        %v791 = vmul.f32 %v759, %v672
        %v792 = vmul.f32 %v760, %v674
        %v793 = vmul.f32 %v761, %v676
        %v794 = vmul.f32 %v762, %v678
        %v795 = vmul.f32 %v763, %v680
        %v796 = vmul.f32 %v764, %v682
        %v797 = vmul.f32 %v765, %v684
        %v798 = vmul.f32 %v766, %v686
        %v799 = vmul.f32 %v767, %v688
        %v800 = vmul.f32 %v768, %v690
        %v801 = vmul.f32 %v769, %v692
        %v802 = vmul.f32 %v770, %v694
        %v803 = vmul.f32 %v771, %v696
        %v804 = vmul.f32 %v772, %v698
        %v805 = vmul.f32 %v773, %v700
        %v806 = vmul.f32 %v774, %v702
        %v807 = vmul.f32 %v775, %v704
        %v808 = vmul.f32 %v776, %v706
        %v809 = vmul.f32 %v777, %v708
        %v810 = vmul.f32 %v778, %v710
        %v811 = vmul.f32 %v779, %v712
        %v812 = vmul.f32 %v780, %v714
        %v813 = vmul.f32 %v781, %v716
        %v814 = vmul.f32 %v782, %v718
        %v815 = vadd.f32 %v783, 1.4214138
        %v816 = vadd.f32 %v784, 1.4214138
        %v817 = vadd.f32 %v785, 1.4214138
        %v818 = vadd.f32 %v786, 1.4214138
        %v819 = vadd.f32 %v787, 1.4214138
        %v820 = vadd.f32 %v788, 1.4214138
        %v821 = vadd.f32 %v789, 1.4214138
        %v822 = vadd.f32 %v790, 1.4214138
        %v823 = vadd.f32 %v791, 1.4214138
        %v824 = vadd.f32 %v792, 1.4214138
        %v825 = vadd.f32 %v793, 1.4214138
        %v826 = vadd.f32 %v794, 1.4214138
        %v827 = vadd.f32 %v795, 1.4214138
        %v828 = vadd.f32 %v796, 1.4214138
        %v829 = vadd.f32 %v797, 1.4214138
        %v830 = vadd.f32 %v798, 1.4214138
        %v831 = vadd.f32 %v799, 1.4214138
        %v832 = vadd.f32 %v800, 1.4214138
        %v833 = vadd.f32 %v801, 1.4214138
        %v834 = vadd.f32 %v802, 1.4214138
        %v835 = vadd.f32 %v803, 1.4214138
        %v836 = vadd.f32 %v804, 1.4214138
        %v837 = vadd.f32 %v805, 1.4214138
        %v838 = vadd.f32 %v806, 1.4214138
        %v839 = vadd.f32 %v807, 1.4214138
        %v840 = vadd.f32 %v808, 1.4214138
        %v841 = vadd.f32 %v809, 1.4214138
        %v842 = vadd.f32 %v810, 1.4214138
        %v843 = vadd.f32 %v811, 1.4214138
        %v844 = vadd.f32 %v812, 1.4214138
        %v845 = vadd.f32 %v813, 1.4214138
        %v846 = vadd.f32 %v814, 1.4214138
        %v847 = vmul.f32 %v815, %v656
        %v848 = vmul.f32 %v816, %v658
        %v849 = vmul.f32 %v817, %v660
        %v850 = vmul.f32 %v818, %v662
        %v851 = vmul.f32 %v819, %v664
        %v852 = vmul.f32 %v820, %v666
        %v853 = vmul.f32 %v821, %v668
        %v854 = vmul.f32 %v822, %v670
        %v855 = vmul.f32 %v823, %v672
        %v856 = vmul.f32 %v824, %v674
        %v857 = vmul.f32 %v825, %v676
        %v858 = vmul.f32 %v826, %v678
        %v859 = vmul.f32 %v827, %v680
        %v860 = vmul.f32 %v828, %v682
        %v861 = vmul.f32 %v829, %v684
        %v862 = vmul.f32 %v830, %v686
        %v863 = vmul.f32 %v831, %v688
        %v864 = vmul.f32 %v832, %v690
        %v865 = vmul.f32 %v833, %v692
        %v866 = vmul.f32 %v834, %v694
        %v867 = vmul.f32 %v835, %v696
        %v868 = vmul.f32 %v836, %v698
        %v869 = vmul.f32 %v837, %v700
        %v870 = vmul.f32 %v838, %v702
        %v871 = vmul.f32 %v839, %v704
        %v872 = vmul.f32 %v840, %v706
        %v873 = vmul.f32 %v841, %v708
        %v874 = vmul.f32 %v842, %v710
        %v875 = vmul.f32 %v843, %v712
        %v876 = vmul.f32 %v844, %v714
        %v877 = vmul.f32 %v845, %v716
        %v878 = vmul.f32 %v846, %v718
        %v879 = vadd.f32 %v847, -0.28449672
        %v880 = vadd.f32 %v848, -0.28449672
        %v881 = vadd.f32 %v849, -0.28449672
        %v882 = vadd.f32 %v850, -0.28449672
        %v883 = vadd.f32 %v851, -0.28449672
        %v884 = vadd.f32 %v852, -0.28449672
        %v885 = vadd.f32 %v853, -0.28449672
        %v886 = vadd.f32 %v854, -0.28449672
        %v887 = vadd.f32 %v855, -0.28449672
        %v888 = vadd.f32 %v856, -0.28449672
        %v889 = vadd.f32 %v857, -0.28449672
        %v890 = vadd.f32 %v858, -0.28449672
        %v891 = vadd.f32 %v859, -0.28449672
        %v892 = vadd.f32 %v860, -0.28449672
        %v893 = vadd.f32 %v861, -0.28449672
        %v894 = vadd.f32 %v862, -0.28449672
        %v895 = vadd.f32 %v863, -0.28449672
        %v896 = vadd.f32 %v864, -0.28449672
        %v897 = vadd.f32 %v865, -0.28449672
        %v898 = vadd.f32 %v866, -0.28449672
        %v899 = vadd.f32 %v867, -0.28449672
        %v900 = vadd.f32 %v868, -0.28449672
        %v901 = vadd.f32 %v869, -0.28449672
        %v902 = vadd.f32 %v870, -0.28449672
        %v903 = vadd.f32 %v871, -0.28449672
        %v904 = vadd.f32 %v872, -0.28449672
        %v905 = vadd.f32 %v873, -0.28449672
        %v906 = vadd.f32 %v874, -0.28449672
        %v907 = vadd.f32 %v875, -0.28449672
        %v908 = vadd.f32 %v876, -0.28449672
        %v909 = vadd.f32 %v877, -0.28449672
        %v910 = vadd.f32 %v878, -0.28449672
        %v911 = vmul.f32 %v879, %v656
        %v912 = vmul.f32 %v880, %v658
        %v913 = vmul.f32 %v881, %v660
        %v914 = vmul.f32 %v882, %v662
        %v915 = vmul.f32 %v883, %v664
        %v916 = vmul.f32 %v884, %v666
        %v917 = vmul.f32 %v885, %v668
        %v918 = vmul.f32 %v886, %v670
        %v919 = vmul.f32 %v887, %v672
        %v920 = vmul.f32 %v888, %v674
        %v921 = vmul.f32 %v889, %v676
        %v922 = vmul.f32 %v890, %v678
        %v923 = vmul.f32 %v891, %v680
        %v924 = vmul.f32 %v892, %v682
        %v925 = vmul.f32 %v893, %v684
        %v926 = vmul.f32 %v894, %v686
        %v927 = vmul.f32 %v895, %v688
        %v928 = vmul.f32 %v896, %v690
        %v929 = vmul.f32 %v897, %v692
        %v930 = vmul.f32 %v898, %v694
        %v931 = vmul.f32 %v899, %v696
        %v932 = vmul.f32 %v900, %v698
        %v933 = vmul.f32 %v901, %v700
        %v934 = vmul.f32 %v902, %v702
        %v935 = vmul.f32 %v903, %v704
        %v936 = vmul.f32 %v904, %v706
        %v937 = vmul.f32 %v905, %v708
        %v938 = vmul.f32 %v906, %v710
        %v939 = vmul.f32 %v907, %v712
        %v940 = vmul.f32 %v908, %v714
        %v941 = vmul.f32 %v909, %v716
        %v942 = vmul.f32 %v910, %v718
        %v943 = vadd.f32 %v911, 0.2548296
        %v944 = vadd.f32 %v912, 0.2548296
        %v945 = vadd.f32 %v913, 0.2548296
        %v946 = vadd.f32 %v914, 0.2548296
        %v947 = vadd.f32 %v915, 0.2548296
        %v948 = vadd.f32 %v916, 0.2548296
        %v949 = vadd.f32 %v917, 0.2548296
        %v950 = vadd.f32 %v918, 0.2548296
        %v951 = vadd.f32 %v919, 0.2548296
        %v952 = vadd.f32 %v920, 0.2548296
        %v953 = vadd.f32 %v921, 0.2548296
        %v954 = vadd.f32 %v922, 0.2548296
        %v955 = vadd.f32 %v923, 0.2548296
        %v956 = vadd.f32 %v924, 0.2548296
        %v957 = vadd.f32 %v925, 0.2548296
        %v958 = vadd.f32 %v926, 0.2548296
        %v959 = vadd.f32 %v927, 0.2548296
        %v960 = vadd.f32 %v928, 0.2548296
        %v961 = vadd.f32 %v929, 0.2548296
        %v962 = vadd.f32 %v930, 0.2548296
        %v963 = vadd.f32 %v931, 0.2548296
        %v964 = vadd.f32 %v932, 0.2548296
        %v965 = vadd.f32 %v933, 0.2548296
        %v966 = vadd.f32 %v934, 0.2548296
        %v967 = vadd.f32 %v935, 0.2548296
        %v968 = vadd.f32 %v936, 0.2548296
        %v969 = vadd.f32 %v937, 0.2548296
        %v970 = vadd.f32 %v938, 0.2548296
        %v971 = vadd.f32 %v939, 0.2548296
        %v972 = vadd.f32 %v940, 0.2548296
        %v973 = vadd.f32 %v941, 0.2548296
        %v974 = vadd.f32 %v942, 0.2548296
        %v975 = vmul.f32 %v943, %v656
        %v976 = vmul.f32 %v944, %v658
        %v977 = vmul.f32 %v945, %v660
        %v978 = vmul.f32 %v946, %v662
        %v979 = vmul.f32 %v947, %v664
        %v980 = vmul.f32 %v948, %v666
        %v981 = vmul.f32 %v949, %v668
        %v982 = vmul.f32 %v950, %v670
        %v983 = vmul.f32 %v951, %v672
        %v984 = vmul.f32 %v952, %v674
        %v985 = vmul.f32 %v953, %v676
        %v986 = vmul.f32 %v954, %v678
        %v987 = vmul.f32 %v955, %v680
        %v988 = vmul.f32 %v956, %v682
        %v989 = vmul.f32 %v957, %v684
        %v990 = vmul.f32 %v958, %v686
        %v991 = vmul.f32 %v959, %v688
        %v992 = vmul.f32 %v960, %v690
        %v993 = vmul.f32 %v961, %v692
        %v994 = vmul.f32 %v962, %v694
        %v995 = vmul.f32 %v963, %v696
        %v996 = vmul.f32 %v964, %v698
        %v997 = vmul.f32 %v965, %v700
        %v998 = vmul.f32 %v966, %v702
        %v999 = vmul.f32 %v967, %v704
        %v1000 = vmul.f32 %v968, %v706
        %v1001 = vmul.f32 %v969, %v708
        %v1002 = vmul.f32 %v970, %v710
        %v1003 = vmul.f32 %v971, %v712
        %v1004 = vmul.f32 %v972, %v714
        %v1005 = vmul.f32 %v973, %v716
        %v1006 = vmul.f32 %v974, %v718
        %v1007 = vsub.f32 0.0, %v559
        %v1008 = vsub.f32 0.0, %v560
        %v1009 = vsub.f32 0.0, %v561
        %v1010 = vsub.f32 0.0, %v562
        %v1011 = vsub.f32 0.0, %v563
        %v1012 = vsub.f32 0.0, %v564
        %v1013 = vsub.f32 0.0, %v565
        %v1014 = vsub.f32 0.0, %v566
        %v1015 = vsub.f32 0.0, %v567
        %v1016 = vsub.f32 0.0, %v568
        %v1017 = vsub.f32 0.0, %v569
        %v1018 = vsub.f32 0.0, %v570
        %v1019 = vsub.f32 0.0, %v571
        %v1020 = vsub.f32 0.0, %v572
        %v1021 = vsub.f32 0.0, %v573
        %v1022 = vsub.f32 0.0, %v574
        %v1023 = vsub.f32 0.0, %v575
        %v1024 = vsub.f32 0.0, %v576
        %v1025 = vsub.f32 0.0, %v577
        %v1026 = vsub.f32 0.0, %v578
        %v1027 = vsub.f32 0.0, %v579
        %v1028 = vsub.f32 0.0, %v580
        %v1029 = vsub.f32 0.0, %v581
        %v1030 = vsub.f32 0.0, %v582
        %v1031 = vsub.f32 0.0, %v583
        %v1032 = vsub.f32 0.0, %v584
        %v1033 = vsub.f32 0.0, %v585
        %v1034 = vsub.f32 0.0, %v586
        %v1035 = vsub.f32 0.0, %v587
        %v1036 = vsub.f32 0.0, %v588
        %v1037 = vsub.f32 0.0, %v589
        %v1038 = vsub.f32 0.0, %v590
        %v1039 = vmul.f32 %v1007, %v559
        %v1040 = vmul.f32 %v1008, %v560
        %v1041 = vmul.f32 %v1009, %v561
        %v1042 = vmul.f32 %v1010, %v562
        %v1043 = vmul.f32 %v1011, %v563
        %v1044 = vmul.f32 %v1012, %v564
        %v1045 = vmul.f32 %v1013, %v565
        %v1046 = vmul.f32 %v1014, %v566
        %v1047 = vmul.f32 %v1015, %v567
        %v1048 = vmul.f32 %v1016, %v568
        %v1049 = vmul.f32 %v1017, %v569
        %v1050 = vmul.f32 %v1018, %v570
        %v1051 = vmul.f32 %v1019, %v571
        %v1052 = vmul.f32 %v1020, %v572
        %v1053 = vmul.f32 %v1021, %v573
        %v1054 = vmul.f32 %v1022, %v574
        %v1055 = vmul.f32 %v1023, %v575
        %v1056 = vmul.f32 %v1024, %v576
        %v1057 = vmul.f32 %v1025, %v577
        %v1058 = vmul.f32 %v1026, %v578
        %v1059 = vmul.f32 %v1027, %v579
        %v1060 = vmul.f32 %v1028, %v580
        %v1061 = vmul.f32 %v1029, %v581
        %v1062 = vmul.f32 %v1030, %v582
        %v1063 = vmul.f32 %v1031, %v583
        %v1064 = vmul.f32 %v1032, %v584
        %v1065 = vmul.f32 %v1033, %v585
        %v1066 = vmul.f32 %v1034, %v586
        %v1067 = vmul.f32 %v1035, %v587
        %v1068 = vmul.f32 %v1036, %v588
        %v1069 = vmul.f32 %v1037, %v589
        %v1070 = vmul.f32 %v1038, %v590
        %v1071 = vmul.f32 %v1039, 1.442695
        %v1072 = vpow.pop %v1071
        %v1073 = vmul.f32 %v1040, 1.442695
        %v1074 = vpow.pop %v1073
        %v1075 = vmul.f32 %v1041, 1.442695
        %v1076 = vpow.pop %v1075
        %v1077 = vmul.f32 %v1042, 1.442695
        %v1078 = vpow.pop %v1077
        %v1079 = vmul.f32 %v1043, 1.442695
        %v1080 = vpow.pop %v1079
        %v1081 = vmul.f32 %v1044, 1.442695
        %v1082 = vpow.pop %v1081
        %v1083 = vmul.f32 %v1045, 1.442695
        %v1084 = vpow.pop %v1083
        %v1085 = vmul.f32 %v1046, 1.442695
        %v1086 = vpow.pop %v1085
        %v1087 = vmul.f32 %v1047, 1.442695
        %v1088 = vpow.pop %v1087
        %v1089 = vmul.f32 %v1048, 1.442695
        %v1090 = vpow.pop %v1089
        %v1091 = vmul.f32 %v1049, 1.442695
        %v1092 = vpow.pop %v1091
        %v1093 = vmul.f32 %v1050, 1.442695
        %v1094 = vpow.pop %v1093
        %v1095 = vmul.f32 %v1051, 1.442695
        %v1096 = vpow.pop %v1095
        %v1097 = vmul.f32 %v1052, 1.442695
        %v1098 = vpow.pop %v1097
        %v1099 = vmul.f32 %v1053, 1.442695
        %v1100 = vpow.pop %v1099
        %v1101 = vmul.f32 %v1054, 1.442695
        %v1102 = vpow.pop %v1101
        %v1103 = vmul.f32 %v1055, 1.442695
        %v1104 = vpow.pop %v1103
        %v1105 = vmul.f32 %v1056, 1.442695
        %v1106 = vpow.pop %v1105
        %v1107 = vmul.f32 %v1057, 1.442695
        %v1108 = vpow.pop %v1107
        %v1109 = vmul.f32 %v1058, 1.442695
        %v1110 = vpow.pop %v1109
        %v1111 = vmul.f32 %v1059, 1.442695
        %v1112 = vpow.pop %v1111
        %v1113 = vmul.f32 %v1060, 1.442695
        %v1114 = vpow.pop %v1113
        %v1115 = vmul.f32 %v1061, 1.442695
        %v1116 = vpow.pop %v1115
        %v1117 = vmul.f32 %v1062, 1.442695
        %v1118 = vpow.pop %v1117
        %v1119 = vmul.f32 %v1063, 1.442695
        %v1120 = vpow.pop %v1119
        %v1121 = vmul.f32 %v1064, 1.442695
        %v1122 = vpow.pop %v1121
        %v1123 = vmul.f32 %v1065, 1.442695
        %v1124 = vpow.pop %v1123
        %v1125 = vmul.f32 %v1066, 1.442695
        %v1126 = vpow.pop %v1125
        %v1127 = vmul.f32 %v1067, 1.442695
        %v1128 = vpow.pop %v1127
        %v1129 = vmul.f32 %v1068, 1.442695
        %v1130 = vpow.pop %v1129
        %v1131 = vmul.f32 %v1069, 1.442695
        %v1132 = vpow.pop %v1131
        %v1133 = vmul.f32 %v1070, 1.442695
        %v1134 = vpow.pop %v1133
        %v1135 = vmul.f32 %v975, %v1072
        %v1136 = vmul.f32 %v976, %v1074
        %v1137 = vmul.f32 %v977, %v1076
        %v1138 = vmul.f32 %v978, %v1078
        %v1139 = vmul.f32 %v979, %v1080
        %v1140 = vmul.f32 %v980, %v1082
        %v1141 = vmul.f32 %v981, %v1084
        %v1142 = vmul.f32 %v982, %v1086
        %v1143 = vmul.f32 %v983, %v1088
        %v1144 = vmul.f32 %v984, %v1090
        %v1145 = vmul.f32 %v985, %v1092
        %v1146 = vmul.f32 %v986, %v1094
        %v1147 = vmul.f32 %v987, %v1096
        %v1148 = vmul.f32 %v988, %v1098
        %v1149 = vmul.f32 %v989, %v1100
        %v1150 = vmul.f32 %v990, %v1102
        %v1151 = vmul.f32 %v991, %v1104
        %v1152 = vmul.f32 %v992, %v1106
        %v1153 = vmul.f32 %v993, %v1108
        %v1154 = vmul.f32 %v994, %v1110
        %v1155 = vmul.f32 %v995, %v1112
        %v1156 = vmul.f32 %v996, %v1114
        %v1157 = vmul.f32 %v997, %v1116
        %v1158 = vmul.f32 %v998, %v1118
        %v1159 = vmul.f32 %v999, %v1120
        %v1160 = vmul.f32 %v1000, %v1122
        %v1161 = vmul.f32 %v1001, %v1124
        %v1162 = vmul.f32 %v1002, %v1126
        %v1163 = vmul.f32 %v1003, %v1128
        %v1164 = vmul.f32 %v1004, %v1130
        %v1165 = vmul.f32 %v1005, %v1132
        %v1166 = vmul.f32 %v1006, %v1134
        %v1167 = vsub.f32 1.0, %v1135
        %v1168 = vsub.f32 1.0, %v1136
        %v1169 = vsub.f32 1.0, %v1137
        %v1170 = vsub.f32 1.0, %v1138
        %v1171 = vsub.f32 1.0, %v1139
        %v1172 = vsub.f32 1.0, %v1140
        %v1173 = vsub.f32 1.0, %v1141
        %v1174 = vsub.f32 1.0, %v1142
        %v1175 = vsub.f32 1.0, %v1143
        %v1176 = vsub.f32 1.0, %v1144
        %v1177 = vsub.f32 1.0, %v1145
        %v1178 = vsub.f32 1.0, %v1146
        %v1179 = vsub.f32 1.0, %v1147
        %v1180 = vsub.f32 1.0, %v1148
        %v1181 = vsub.f32 1.0, %v1149
        %v1182 = vsub.f32 1.0, %v1150
        %v1183 = vsub.f32 1.0, %v1151
        %v1184 = vsub.f32 1.0, %v1152
        %v1185 = vsub.f32 1.0, %v1153
        %v1186 = vsub.f32 1.0, %v1154
        %v1187 = vsub.f32 1.0, %v1155
        %v1188 = vsub.f32 1.0, %v1156
        %v1189 = vsub.f32 1.0, %v1157
        %v1190 = vsub.f32 1.0, %v1158
        %v1191 = vsub.f32 1.0, %v1159
        %v1192 = vsub.f32 1.0, %v1160
        %v1193 = vsub.f32 1.0, %v1161
        %v1194 = vsub.f32 1.0, %v1162
        %v1195 = vsub.f32 1.0, %v1163
        %v1196 = vsub.f32 1.0, %v1164
        %v1197 = vsub.f32 1.0, %v1165
        %v1198 = vsub.f32 1.0, %v1166
        %vm1199 = vcmp.ge.f32.partialorder %v527, 0.0
        %vm1200 = vcmp.ge.f32.partialorder %v528, 0.0
        %vm1201 = vcmp.ge.f32.partialorder %v529, 0.0
        %vm1202 = vcmp.ge.f32.partialorder %v530, 0.0
        %vm1203 = vcmp.ge.f32.partialorder %v531, 0.0
        %vm1204 = vcmp.ge.f32.partialorder %v532, 0.0
        %vm1205 = vcmp.ge.f32.partialorder %v533, 0.0
        %vm1206 = vcmp.ge.f32.partialorder %v534, 0.0
        %vm1207 = vcmp.ge.f32.partialorder %v535, 0.0
        %vm1208 = vcmp.ge.f32.partialorder %v536, 0.0
        %vm1209 = vcmp.ge.f32.partialorder %v537, 0.0
        %vm1210 = vcmp.ge.f32.partialorder %v538, 0.0
        %vm1211 = vcmp.ge.f32.partialorder %v539, 0.0
        %vm1212 = vcmp.ge.f32.partialorder %v540, 0.0
        %vm1213 = vcmp.ge.f32.partialorder %v541, 0.0
        %vm1214 = vcmp.ge.f32.partialorder %v542, 0.0
        %vm1215 = vcmp.ge.f32.partialorder %v543, 0.0
        %vm1216 = vcmp.ge.f32.partialorder %v544, 0.0
        %vm1217 = vcmp.ge.f32.partialorder %v545, 0.0
        %vm1218 = vcmp.ge.f32.partialorder %v546, 0.0
        %vm1219 = vcmp.ge.f32.partialorder %v547, 0.0
        %vm1220 = vcmp.ge.f32.partialorder %v548, 0.0
        %vm1221 = vcmp.ge.f32.partialorder %v549, 0.0
        %vm1222 = vcmp.ge.f32.partialorder %v550, 0.0
        %vm1223 = vcmp.ge.f32.partialorder %v551, 0.0
        %vm1224 = vcmp.ge.f32.partialorder %v552, 0.0
        %vm1225 = vcmp.ge.f32.partialorder %v553, 0.0
        %vm1226 = vcmp.ge.f32.partialorder %v554, 0.0
        %vm1227 = vcmp.ge.f32.partialorder %v555, 0.0
        %vm1228 = vcmp.ge.f32.partialorder %v556, 0.0
        %vm1229 = vcmp.ge.f32.partialorder %v557, 0.0
        %vm1230 = vcmp.ge.f32.partialorder %v558, 0.0
        %v1231 = vsub.f32 0.0, %v1167
        %v1232 = vsub.f32 0.0, %v1168
        %v1233 = vsub.f32 0.0, %v1169
        %v1234 = vsub.f32 0.0, %v1170
        %v1235 = vsub.f32 0.0, %v1171
        %v1236 = vsub.f32 0.0, %v1172
        %v1237 = vsub.f32 0.0, %v1173
        %v1238 = vsub.f32 0.0, %v1174
        %v1239 = vsub.f32 0.0, %v1175
        %v1240 = vsub.f32 0.0, %v1176
        %v1241 = vsub.f32 0.0, %v1177
        %v1242 = vsub.f32 0.0, %v1178
        %v1243 = vsub.f32 0.0, %v1179
        %v1244 = vsub.f32 0.0, %v1180
        %v1245 = vsub.f32 0.0, %v1181
        %v1246 = vsub.f32 0.0, %v1182
        %v1247 = vsub.f32 0.0, %v1183
        %v1248 = vsub.f32 0.0, %v1184
        %v1249 = vsub.f32 0.0, %v1185
        %v1250 = vsub.f32 0.0, %v1186
        %v1251 = vsub.f32 0.0, %v1187
        %v1252 = vsub.f32 0.0, %v1188
        %v1253 = vsub.f32 0.0, %v1189
        %v1254 = vsub.f32 0.0, %v1190
        %v1255 = vsub.f32 0.0, %v1191
        %v1256 = vsub.f32 0.0, %v1192
        %v1257 = vsub.f32 0.0, %v1193
        %v1258 = vsub.f32 0.0, %v1194
        %v1259 = vsub.f32 0.0, %v1195
        %v1260 = vsub.f32 0.0, %v1196
        %v1261 = vsub.f32 0.0, %v1197
        %v1262 = vsub.f32 0.0, %v1198
        %v1263 = vsel %vm1199, %v1167, %v1231
        %v1264 = vsel %vm1200, %v1168, %v1232
        %v1265 = vsel %vm1201, %v1169, %v1233
        %v1266 = vsel %vm1202, %v1170, %v1234
        %v1267 = vsel %vm1203, %v1171, %v1235
        %v1268 = vsel %vm1204, %v1172, %v1236
        %v1269 = vsel %vm1205, %v1173, %v1237
        %v1270 = vsel %vm1206, %v1174, %v1238
        %v1271 = vsel %vm1207, %v1175, %v1239
        %v1272 = vsel %vm1208, %v1176, %v1240
        %v1273 = vsel %vm1209, %v1177, %v1241
        %v1274 = vsel %vm1210, %v1178, %v1242
        %v1275 = vsel %vm1211, %v1179, %v1243
        %v1276 = vsel %vm1212, %v1180, %v1244
        %v1277 = vsel %vm1213, %v1181, %v1245
        %v1278 = vsel %vm1214, %v1182, %v1246
        %v1279 = vsel %vm1215, %v1183, %v1247
        %v1280 = vsel %vm1216, %v1184, %v1248
        %v1281 = vsel %vm1217, %v1185, %v1249
        %v1282 = vsel %vm1218, %v1186, %v1250
        %v1283 = vsel %vm1219, %v1187, %v1251
        %v1284 = vsel %vm1220, %v1188, %v1252
        %v1285 = vsel %vm1221, %v1189, %v1253
        %v1286 = vsel %vm1222, %v1190, %v1254
        %v1287 = vsel %vm1223, %v1191, %v1255
        %v1288 = vsel %vm1224, %v1192, %v1256
        %v1289 = vsel %vm1225, %v1193, %v1257
        %v1290 = vsel %vm1226, %v1194, %v1258
        %v1291 = vsel %vm1227, %v1195, %v1259
        %v1292 = vsel %vm1228, %v1196, %v1260
        %v1293 = vsel %vm1229, %v1197, %v1261
        %v1294 = vsel %vm1230, %v1198, %v1262
        %v1295 = vadd.f32 %v1263, 1.0
        %v1296 = vadd.f32 %v1264, 1.0
        %v1297 = vadd.f32 %v1265, 1.0
        %v1298 = vadd.f32 %v1266, 1.0
        %v1299 = vadd.f32 %v1267, 1.0
        %v1300 = vadd.f32 %v1268, 1.0
        %v1301 = vadd.f32 %v1269, 1.0
        %v1302 = vadd.f32 %v1270, 1.0
        %v1303 = vadd.f32 %v1271, 1.0
        %v1304 = vadd.f32 %v1272, 1.0
        %v1305 = vadd.f32 %v1273, 1.0
        %v1306 = vadd.f32 %v1274, 1.0
        %v1307 = vadd.f32 %v1275, 1.0
        %v1308 = vadd.f32 %v1276, 1.0
        %v1309 = vadd.f32 %v1277, 1.0
        %v1310 = vadd.f32 %v1278, 1.0
        %v1311 = vadd.f32 %v1279, 1.0
        %v1312 = vadd.f32 %v1280, 1.0
        %v1313 = vadd.f32 %v1281, 1.0
        %v1314 = vadd.f32 %v1282, 1.0
        %v1315 = vadd.f32 %v1283, 1.0
        %v1316 = vadd.f32 %v1284, 1.0
        %v1317 = vadd.f32 %v1285, 1.0
        %v1318 = vadd.f32 %v1286, 1.0
        %v1319 = vadd.f32 %v1287, 1.0
        %v1320 = vadd.f32 %v1288, 1.0
        %v1321 = vadd.f32 %v1289, 1.0
        %v1322 = vadd.f32 %v1290, 1.0
        %v1323 = vadd.f32 %v1291, 1.0
        %v1324 = vadd.f32 %v1292, 1.0
        %v1325 = vadd.f32 %v1293, 1.0
        %v1326 = vadd.f32 %v1294, 1.0
        %v1327 = vmul.f32 %v495, %v1295
        %v1328 = vmul.f32 %v496, %v1296
        %v1329 = vmul.f32 %v497, %v1297
        %v1330 = vmul.f32 %v498, %v1298
        %v1331 = vmul.f32 %v499, %v1299
        %v1332 = vmul.f32 %v500, %v1300
        %v1333 = vmul.f32 %v501, %v1301
        %v1334 = vmul.f32 %v502, %v1302
        %v1335 = vmul.f32 %v503, %v1303
        %v1336 = vmul.f32 %v504, %v1304
        %v1337 = vmul.f32 %v505, %v1305
        %v1338 = vmul.f32 %v506, %v1306
        %v1339 = vmul.f32 %v507, %v1307
        %v1340 = vmul.f32 %v508, %v1308
        %v1341 = vmul.f32 %v509, %v1309
        %v1342 = vmul.f32 %v510, %v1310
        %v1343 = vmul.f32 %v511, %v1311
        %v1344 = vmul.f32 %v512, %v1312
        %v1345 = vmul.f32 %v513, %v1313
        %v1346 = vmul.f32 %v514, %v1314
        %v1347 = vmul.f32 %v515, %v1315
        %v1348 = vmul.f32 %v516, %v1316
        %v1349 = vmul.f32 %v517, %v1317
        %v1350 = vmul.f32 %v518, %v1318
        %v1351 = vmul.f32 %v519, %v1319
        %v1352 = vmul.f32 %v520, %v1320
        %v1353 = vmul.f32 %v521, %v1321
        %v1354 = vmul.f32 %v522, %v1322
        %v1355 = vmul.f32 %v523, %v1323
        %v1356 = vmul.f32 %v524, %v1324
        %v1357 = vmul.f32 %v525, %v1325
        %v1358 = vmul.f32 %v526, %v1326
        %v1359 = vld [vmem:[#allocation7] sm:$0xff]
        %v1360 = vld [vmem:[#allocation7 + $0x8] sm:$0xff]
        %v1361 = vld [vmem:[#allocation7 + $0x10] sm:$0xff]
        %v1362 = vld [vmem:[#allocation7 + $0x18] sm:$0xff]
        %v1363 = vld [vmem:[#allocation7 + $0x20] sm:$0xff]
        %v1364 = vld [vmem:[#allocation7 + $0x28] sm:$0xff]
        %v1365 = vld [vmem:[#allocation7 + $0x30] sm:$0xff]
        %v1366 = vld [vmem:[#allocation7 + $0x38] sm:$0xff]
        %v1367 = vld [vmem:[#allocation7 + $0x40] sm:$0xff]
        %v1368 = vld [vmem:[#allocation7 + $0x48] sm:$0xff]
        %v1369 = vld [vmem:[#allocation7 + $0x50] sm:$0xff]
        %v1370 = vld [vmem:[#allocation7 + $0x58] sm:$0xff]
        %v1371 = vld [vmem:[#allocation7 + $0x60] sm:$0xff]
        %v1372 = vld [vmem:[#allocation7 + $0x68] sm:$0xff]
        %v1373 = vld [vmem:[#allocation7 + $0x70] sm:$0xff]
        %v1374 = vld [vmem:[#allocation7 + $0x78] sm:$0xff]
        %v1375 = vld [vmem:[#allocation7 + $0x80] sm:$0xff]
        %v1376 = vld [vmem:[#allocation7 + $0x88] sm:$0xff]
        %v1377 = vld [vmem:[#allocation7 + $0x90] sm:$0xff]
        %v1378 = vld [vmem:[#allocation7 + $0x98] sm:$0xff]
        %v1379 = vld [vmem:[#allocation7 + $0xa0] sm:$0xff]
        %v1380 = vld [vmem:[#allocation7 + $0xa8] sm:$0xff]
        %v1381 = vld [vmem:[#allocation7 + $0xb0] sm:$0xff]
        %v1382 = vld [vmem:[#allocation7 + $0xb8] sm:$0xff]
        %v1383 = vld [vmem:[#allocation7 + $0xc0] sm:$0xff]
        %v1384 = vld [vmem:[#allocation7 + $0xc8] sm:$0xff]
        %v1385 = vld [vmem:[#allocation7 + $0xd0] sm:$0xff]
        %v1386 = vld [vmem:[#allocation7 + $0xd8] sm:$0xff]
        %v1387 = vld [vmem:[#allocation7 + $0xe0] sm:$0xff]
        %v1388 = vld [vmem:[#allocation7 + $0xe8] sm:$0xff]
        %v1389 = vld [vmem:[#allocation7 + $0xf0] sm:$0xff]
        %v1390 = vld [vmem:[#allocation7 + $0xf8] sm:$0xff]
        %v1391 = vld [vmem:[%s4] sm:$0x1]
        %v1393 = vlaneseq
        %v1394 = vshrl.u32 %v1393, 7
        %v1395 = vsub.s32 0, %v1394
        %v1396 = vrot.slane %v1391, %v1395
        %1398 = vmatprep.subr.mxu0 0.0
        %1399 = vmatpush1.msra.mxu0 %v1374
        %1400 = vmatprep.subr.mxu0 0.0
        %1401 = vmatpush1.msra.mxu0 %v1373
        %1402 = vmatprep.subr.mxu0 0.0
        %1403 = vmatpush1.msra.mxu0 %v1372
        %1404 = vmatprep.subr.mxu0 0.0
        %1405 = vmatpush1.msra.mxu0 %v1371
        %1406 = vmatprep.subr.mxu0 0.0
        %1407 = vmatpush1.msra.mxu0 %v1370
        %1408 = vmatprep.subr.mxu0 0.0
        %1409 = vmatpush1.msra.mxu0 %v1369
        %1410 = vmatprep.subr.mxu0 0.0
        %1411 = vmatpush1.msra.mxu0 %v1368
        %1412 = vmatprep.subr.mxu0 0.0
        %1413 = vmatpush1.msra.mxu0 %v1367
        %1414 = vmatprep.subr.mxu0 0.0
        %1415 = vmatpush1.msra.mxu0 %v1366
        %1416 = vmatprep.subr.mxu0 0.0
        %1417 = vmatpush1.msra.mxu0 %v1365
        %1418 = vmatprep.subr.mxu0 0.0
        %1419 = vmatpush1.msra.mxu0 %v1364
        %1420 = vmatprep.subr.mxu0 0.0
        %1421 = vmatpush1.msra.mxu0 %v1363
        %1422 = vmatprep.subr.mxu0 0.0
        %1423 = vmatpush1.msra.mxu0 %v1362
        %1424 = vmatprep.subr.mxu0 0.0
        %1425 = vmatpush1.msra.mxu0 %v1361
        %1426 = vmatprep.subr.mxu0 0.0
        %1427 = vmatpush1.msra.mxu0 %v1360
        %1428 = vmatprep.subr.mxu0 0.0
        %1429 = vmatpush1.msra.mxu0 %v1359
        %1430 = vmatprep.subr.mxu0 0.0
        %1431 = vmatpush2.msra.mxu0 %v1390
        %1432 = vmatprep.subr.mxu0 0.0
        %1433 = vmatpush2.msra.mxu0 %v1389
        %1434 = vmatprep.subr.mxu0 0.0
        %1435 = vmatpush2.msra.mxu0 %v1388
        %1436 = vmatprep.subr.mxu0 0.0
        %1437 = vmatpush2.msra.mxu0 %v1387
        %1438 = vmatprep.subr.mxu0 0.0
        %1439 = vmatpush2.msra.mxu0 %v1386
        %1440 = vmatprep.subr.mxu0 0.0
        %1441 = vmatpush2.msra.mxu0 %v1385
        %1442 = vmatprep.subr.mxu0 0.0
        %1443 = vmatpush2.msra.mxu0 %v1384
        %1444 = vmatprep.subr.mxu0 0.0
        %1445 = vmatpush2.msra.mxu0 %v1383
        %1446 = vmatprep.subr.mxu0 0.0
        %1447 = vmatpush2.msra.mxu0 %v1382
        %1448 = vmatprep.subr.mxu0 0.0
        %1449 = vmatpush2.msra.mxu0 %v1381
        %1450 = vmatprep.subr.mxu0 0.0
        %1451 = vmatpush2.msra.mxu0 %v1380
        %1452 = vmatprep.subr.mxu0 0.0
        %1453 = vmatpush2.msra.mxu0 %v1379
        %1454 = vmatprep.subr.mxu0 0.0
        %1455 = vmatpush2.msra.mxu0 %v1378
        %1456 = vmatprep.subr.mxu0 0.0
        %1457 = vmatpush2.msra.mxu0 %v1377
        %1458 = vmatprep.subr.mxu0 0.0
        %1459 = vmatpush2.msra.mxu0 %v1376
        %1460 = vmatprep.subr.mxu0 0.0
        %1461 = vmatpush2.msra.mxu0 %v1375
        %1462 = vmatprep.mubr.f32.mxu0 %v1328
        %1463 = vmatmul.mubr.f32.gmra.mxu0 %v1327
        %v1464 = vpop.f32.mrf.mxu0
        %v1465 = vadd.f32 %v1396, %v1464
        %v1466 = vpop.f32.mrf.mxu0
        %1467 = vmatprep.mubr.f32.mxu0 %v1330
        %1468 = vmatmul.mubr.f32.gmra.mxu0 %v1329
        %v1469 = vpop.f32.mrf.mxu0
        %v1470 = vadd.f32 %v1396, %v1469
        %v1471 = vpop.f32.mrf.mxu0
        %1472 = vmatprep.mubr.f32.mxu0 %v1332
        %1473 = vmatmul.mubr.f32.gmra.mxu0 %v1331
        %v1474 = vpop.f32.mrf.mxu0
        %v1475 = vadd.f32 %v1396, %v1474
        %v1476 = vpop.f32.mrf.mxu0
        %1477 = vmatprep.mubr.f32.mxu0 %v1334
        %1478 = vmatmul.mubr.f32.gmra.mxu0 %v1333
        %v1479 = vpop.f32.mrf.mxu0
        %v1480 = vadd.f32 %v1396, %v1479
        %v1481 = vpop.f32.mrf.mxu0
        %1482 = vmatprep.mubr.f32.mxu0 %v1336
        %1483 = vmatmul.mubr.f32.gmra.mxu0 %v1335
        %v1484 = vpop.f32.mrf.mxu0
        %v1485 = vadd.f32 %v1396, %v1484
        %v1486 = vpop.f32.mrf.mxu0
        %1487 = vmatprep.mubr.f32.mxu0 %v1338
        %1488 = vmatmul.mubr.f32.gmra.mxu0 %v1337
        %v1489 = vpop.f32.mrf.mxu0
        %v1490 = vadd.f32 %v1396, %v1489
        %v1491 = vpop.f32.mrf.mxu0
        %1492 = vmatprep.mubr.f32.mxu0 %v1340
        %1493 = vmatmul.mubr.f32.gmra.mxu0 %v1339
        %v1494 = vpop.f32.mrf.mxu0
        %v1495 = vadd.f32 %v1396, %v1494
        %v1496 = vpop.f32.mrf.mxu0
        %1497 = vmatprep.mubr.f32.mxu0 %v1342
        %1498 = vmatmul.mubr.f32.gmra.mxu0 %v1341
        %v1499 = vpop.f32.mrf.mxu0
        %v1500 = vadd.f32 %v1396, %v1499
        %v1501 = vpop.f32.mrf.mxu0
        %1502 = vmatprep.mubr.f32.mxu0 %v1344
        %1503 = vmatmul.mubr.f32.gmra.mxu0 %v1343
        %v1504 = vpop.f32.mrf.mxu0
        %v1505 = vadd.f32 %v1396, %v1504
        %v1506 = vpop.f32.mrf.mxu0
        %1507 = vmatprep.mubr.f32.mxu0 %v1346
        %1508 = vmatmul.mubr.f32.gmra.mxu0 %v1345
        %v1509 = vpop.f32.mrf.mxu0
        %v1510 = vadd.f32 %v1396, %v1509
        %v1511 = vpop.f32.mrf.mxu0
        %1512 = vmatprep.mubr.f32.mxu0 %v1348
        %1513 = vmatmul.mubr.f32.gmra.mxu0 %v1347
        %v1514 = vpop.f32.mrf.mxu0
        %v1515 = vadd.f32 %v1396, %v1514
        %v1516 = vpop.f32.mrf.mxu0
        %1517 = vmatprep.mubr.f32.mxu0 %v1350
        %1518 = vmatmul.mubr.f32.gmra.mxu0 %v1349
        %v1519 = vpop.f32.mrf.mxu0
        %v1520 = vadd.f32 %v1396, %v1519
        %v1521 = vpop.f32.mrf.mxu0
        %1522 = vmatprep.mubr.f32.mxu0 %v1352
        %1523 = vmatmul.mubr.f32.gmra.mxu0 %v1351
        %v1524 = vpop.f32.mrf.mxu0
        %v1525 = vadd.f32 %v1396, %v1524
        %v1526 = vpop.f32.mrf.mxu0
        %1527 = vmatprep.mubr.f32.mxu0 %v1354
        %1528 = vmatmul.mubr.f32.gmra.mxu0 %v1353
        %v1529 = vpop.f32.mrf.mxu0
        %v1530 = vadd.f32 %v1396, %v1529
        %v1531 = vpop.f32.mrf.mxu0
        %1532 = vmatprep.mubr.f32.mxu0 %v1356
        %1533 = vmatmul.mubr.f32.gmra.mxu0 %v1355
        %v1534 = vpop.f32.mrf.mxu0
        %v1535 = vadd.f32 %v1396, %v1534
        %v1536 = vpop.f32.mrf.mxu0
        %1537 = vmatprep.mubr.f32.mxu0 %v1358
        %1538 = vmatmul.mubr.f32.gmra.mxu0 %v1357
        %v1539 = vpop.f32.mrf.mxu0
        %v1540 = vadd.f32 %v1396, %v1539
        %v1541 = vpop.f32.mrf.mxu0
        %1542 = vdwg.mxu0
        %1543 = vst [vmem:[%s271] sm:$0xff] %v1465
        %1544 = vst [vmem:[%s271 + $0x8] sm:$0xff] %v1470
        %1545 = vst [vmem:[%s271 + $0x10] sm:$0xff] %v1475
        %1546 = vst [vmem:[%s271 + $0x18] sm:$0xff] %v1480
        %1547 = vst [vmem:[%s271 + $0x20] sm:$0xff] %v1485
        %1548 = vst [vmem:[%s271 + $0x28] sm:$0xff] %v1490
        %1549 = vst [vmem:[%s271 + $0x30] sm:$0xff] %v1495
        %1550 = vst [vmem:[%s271 + $0x38] sm:$0xff] %v1500
        %1551 = vst [vmem:[%s271 + $0x40] sm:$0xff] %v1505
        %1552 = vst [vmem:[%s271 + $0x48] sm:$0xff] %v1510
        %1553 = vst [vmem:[%s271 + $0x50] sm:$0xff] %v1515
        %1554 = vst [vmem:[%s271 + $0x58] sm:$0xff] %v1520
        %1555 = vst [vmem:[%s271 + $0x60] sm:$0xff] %v1525
        %1556 = vst [vmem:[%s271 + $0x68] sm:$0xff] %v1530
        %1557 = vst [vmem:[%s271 + $0x70] sm:$0xff] %v1535
        %1558 = vst [vmem:[%s271 + $0x78] sm:$0xff] %v1540
        %s1559 = sand.u32 %s141, 1
        %s1560 = scalar_lea.sflag [#allocation4], %s1559
        %s1561 = sand.u32 %s141, 1
        %s1562 = smul.addr %s1561, 128
        %s1563 = scalar_lea.vmem [#allocation8], %s1562
        // Predicated region
        $region53: #{mlp_forward.1} parent=39 // pred_check
          %p1564 = pneg %p151
        $region54: #{mlp_forward.1} parent=39 // pred_check_branch
          %1566 = sbr.rel (%p1564) target = $region56
        $region55: #{mlp_forward.1} parent=39 // pred_region
          %s1567 = smul.u32 16, %s23
          %s1569 = ssub.s32 2048, 2048
          %1570 = vsyncadd %s1560, %s1569
          %s1571 = smul.addr %s1567, 128
          %s1572 = scalar_lea.hbm %s5, %s1571
          %s1573 = sshll.u32 %s1563, 4
          %s1574 = int_to_ptr.vmem [resolvable:$true] %s1573
          %1579 = dma.vmem_to_hbm [thread:$0]  %s1574, 2048, %s1572, %s1560, 128, 128, 8
        $region56: #{mlp_forward.1} parent=39 // pred_fallthru
          _
      $region40: #{mlp_forward.1} parent=5 // pred_fallthru
        _
      %p1580 = scmp.le.s32.totalorder 2, %s18
      // Predicated region
      $region57: #{mlp_forward.1} parent=5 // pred_check
        %p1581 = pneg %p1580
      $region58: #{mlp_forward.1} parent=5 // pred_check_branch
        %1583 = sbr.rel (%p1581) target = $region60
      $region59: #{mlp_forward.1} parent=5 // pred_region
        %s1584 = ssub.s32 %s18, 2
        // Predicated region
        $region61: #{mlp_forward.1} parent=59 // pred_check
          %p1585 = pneg %p157
        $region62: #{mlp_forward.1} parent=59 // pred_check_branch
          %1587 = sbr.rel (%p1585) target = $region64
        $region63: #{mlp_forward.1} parent=59 // pred_region
          %s1588 = sand.u32 %s142, 1
          %s1589 = scalar_lea.sflag [#allocation4], %s1588
          %s1590 = sand.u32 %s142, 1
          %s1591 = smul.addr %s1590, 128
          %s1592 = scalar_lea.vmem [#allocation8], %s1591
          %1593 = dma.done %s1589, 2048
        $region64: #{mlp_forward.1} parent=59 // pred_fallthru
          _
      $region60: #{mlp_forward.1} parent=5 // pred_fallthru
        _
    $region6: #{mlp_forward.1} parent=1 // loop_footer
      %s22 = sadd.s32 1, %s18
    $region7: #{mlp_forward.1} parent=1 // loop_footer_branch
      %17 = sbr.rel target = $region3
    $region8: #{mlp_forward.1} parent=1 // loop_exit
      _
    %1594 = vsyncpa [#allocation3], 1
    %s1595 = scalar_lea.sflag [#allocation3], 1
    %1596 = vsyncpa %s1595, 1
    %1597 = vsyncpa [#allocation6], 1
    %1598 = vsyncpa [#allocation4], 1
    %s1599 = scalar_lea.sflag [#allocation4], 1
    %1600 = vsyncpa %s1599, 1

</llo_original>
